<compile_context>
chip_gen: v7x
topology: tpu7x:2x2x1
jax: 0.10.0
libtpu: 0.0.40
codegen_flags: <defaults>
</compile_context>

<pallas_src>
import functools
from typing import NamedTuple

import jax
import jax.numpy as jnp
from jax import lax
from jax.experimental import pallas as pl
from jax.experimental.pallas import tpu as pltpu


def _round_up(v, m):
    return ((v + m - 1) // m) * m


def _largest_tile(n_pad, cap):
    """Largest multiple of 128 that divides n_pad and is <= cap."""
    t = min(cap, n_pad)
    t -= t % 128
    while n_pad % t:
        t -= 128
    return t


class Plan(NamedTuple):
    n: int
    nfeat: int
    nhid: int
    n_pad: int
    f_pad: int
    h_pad: int
    tm_a: int              # row tile for kernel A (x @ W)
    tm_b: int              # row tile for kernel B (adj @ support)
    tk_b: int              # adj contraction tile for kernel B
    resident_support: bool  # keep full support matrix resident in VMEM


def make_plan(n, nfeat, nhid, *, tm_a_cap=1024, tm_b_cap=512, tk_b_cap=512,
              compute_dtype=jnp.bfloat16, resident_budget_bytes=24 << 20):
    """Static tiling plan derived from problem sizes (adaptive for small N)."""
    n_pad = _round_up(n, 128)          # lane-dense adj columns, no lcm-256 blowup
    f_pad = _round_up(nfeat, 128)
    h_pad = _round_up(nhid, 128)
    tm_a = _largest_tile(n_pad, tm_a_cap)
    tm_b = _largest_tile(n_pad, tm_b_cap)
    tk_b = _largest_tile(n_pad, tk_b_cap)
    widest = max(f_pad, h_pad)
    item = jnp.dtype(compute_dtype).itemsize
    # Resident support (double-buffer allocation) must stay well inside v7x's
    # 64 MiB VMEM; v5e/v6e have 2x the headroom.
    resident = 2 * n_pad * widest * item <= resident_budget_bytes
    return Plan(n, nfeat, nhid, n_pad, f_pad, h_pad, tm_a, tm_b, tk_b, resident)


def prepare_graph(adj, plan, compute_dtype=jnp.bfloat16):
    """Pad/cast adjacency and build the per-tile sparsity routing table.

    Hoisted out of the forward: run ONCE per graph and reuse across calls
    (re-doing the pad + bf16 cast every call costs ~1.5x kernel B's HBM bytes).
    Table row 0: tile-nonzero flag; rows 1/2: routed (i, k) block index -- zero
    tiles are routed to the most recent nonzero tile so the pipeline skips
    their DMA.  SMEM footprint of the table scales with the tile count (fine
    for graphs up to tens of thousands of nodes at these tile sizes).
    """
    n_pad, tm, tk = plan.n_pad, plan.tm_b, plan.tk_b
    n = adj.shape[0]
    adj_p = jnp.pad(adj, ((0, n_pad - n), (0, n_pad - n))).astype(compute_dtype)

    gi, gk = n_pad // tm, n_pad // tk
    nnz = (adj_p.reshape(gi, tm, gk, tk) != 0).any(axis=(1, 3)).reshape(gi * gk)
    idx = jnp.arange(gi * gk, dtype=jnp.int32)
    last_nz = lax.cummax(jnp.where(nnz, idx, -1))
    routed = jnp.maximum(last_nz, 0)
    tile_tbl = jnp.stack([nnz.astype(jnp.int32),
                          (routed // gk).astype(jnp.int32),
                          (routed % gk).astype(jnp.int32)], axis=0)
    return adj_p, tile_tbl


# --------------------------------------------------------------------------
# Kernel A: support = x @ W   (row-tiled, W grid-invariant / resident)
# --------------------------------------------------------------------------
def _xw_kernel(x_ref, w_ref, o_ref):
    o_ref[...] = jnp.dot(
        x_ref[...], w_ref[...], preferred_element_type=jnp.float32
    ).astype(o_ref.dtype)


def _matmul_xw(x, w, *, tm, out_dtype):
    n_pad, f_in = x.shape
    f_out = w.shape[1]
    # W's index_map is constant -> DMA'd once and kept resident (no re-fetch).
    vmem_bytes = (2 * tm * f_in * x.dtype.itemsize
                  + 2 * f_in * f_out * w.dtype.itemsize
                  + 2 * tm * f_out * jnp.dtype(out_dtype).itemsize)
    return pl.pallas_call(
        _xw_kernel,
        out_shape=jax.ShapeDtypeStruct((n_pad, f_out), out_dtype),
        grid_spec=pltpu.PrefetchScalarGridSpec(
            num_scalar_prefetch=0,
            grid=(n_pad // tm,),
            in_specs=[
                pl.BlockSpec((tm, f_in), lambda i: (i, 0)),
                pl.BlockSpec((f_in, f_out), lambda i: (0, 0)),
            ],
            out_specs=pl.BlockSpec((tm, f_out), lambda i: (i, 0)),
        ),
        compiler_params=pltpu.CompilerParams(
            dimension_semantics=("parallel",),
            vmem_limit_bytes=min(int(vmem_bytes) + (8 << 20), 64 << 20),
        ),
    )(x, w)


# --------------------------------------------------------------------------
# Kernel B: out = maybe_relu(adj @ support + b)
#   - f32 VMEM accumulator, reduction axis innermost ("arbitrary")
#   - support resident in VMEM when it fits; otherwise streamed (tk, f_out)
#   - all-zero adj tiles: DMA routed away + MXU work skipped via pl.when
# --------------------------------------------------------------------------
def _adj_matmul_kernel(tbl_ref, adj_ref, s_ref, b_ref, o_ref, acc_ref, *,
                       tk, gk, apply_relu, resident_support):
    i = pl.program_id(0)
    k = pl.program_id(1)
    t = i * gk + k

    @pl.when(k == 0)
    def _():
        acc_ref[...] = jnp.zeros_like(acc_ref)

    @pl.when(tbl_ref[0, t] != 0)
    def _():
        if resident_support:
            s = s_ref[pl.ds(pl.multiple_of(k * tk, tk), tk), :]
        else:
            s = s_ref[...]
        acc_ref[...] += jnp.dot(adj_ref[...], s,
                                preferred_element_type=jnp.float32)

    # Bias / relu only once, on the final reduction step.
    @pl.when(k == gk - 1)
    def _():
        out = acc_ref[...] + b_ref[...]
        if apply_relu:
            out = jnp.maximum(out, 0.0)
        o_ref[...] = out.astype(o_ref.dtype)


def _adj_matmul(adj, support, b2d, tile_tbl, *, tm, tk, apply_relu,
                resident_support, out_dtype):
    n_pad = adj.shape[0]
    f_out = support.shape[1]
    gi, gk = n_pad // tm, n_pad // tk

    if resident_support:
        # Grid-invariant block: DMA'd once, never re-fetched -> kernel B's HBM
        # traffic collapses to a single pass over the nonzero adj tiles.
        s_spec = pl.BlockSpec((n_pad, f_out), lambda i, k, tbl: (0, 0))
        s_rows = n_pad
    else:
        s_spec = pl.BlockSpec((tk, f_out), lambda i, k, tbl: (k, 0))
        s_rows = tk

    def adj_index_map(i, k, tbl):
        t = i * gk + k
        return (tbl[1, t], tbl[2, t])

    vmem_bytes = (2 * tm * tk * adj.dtype.itemsize
                  + 2 * s_rows * f_out * support.dtype.itemsize
                  + 2 * f_out * b2d.dtype.itemsize
                  + 2 * tm * f_out * jnp.dtype(out_dtype).itemsize
                  + tm * f_out * 4)

    kernel = functools.partial(_adj_matmul_kernel, tk=tk, gk=gk,
                               apply_relu=apply_relu,
                               resident_support=resident_support)
    return pl.pallas_call(
        kernel,
        out_shape=jax.ShapeDtypeStruct((n_pad, f_out), out_dtype),
        grid_spec=pltpu.PrefetchScalarGridSpec(
            num_scalar_prefetch=1,
            grid=(gi, gk),
            in_specs=[
                pl.BlockSpec((tm, tk), adj_index_map),
                s_spec,
                pl.BlockSpec((1, f_out), lambda i, k, tbl: (0, 0)),
            ],
            out_specs=pl.BlockSpec((tm, f_out), lambda i, k, tbl: (i, 0)),
            scratch_shapes=[pltpu.VMEM((tm, f_out), jnp.float32)],
        ),
        compiler_params=pltpu.CompilerParams(
            dimension_semantics=("parallel", "arbitrary"),
            vmem_limit_bytes=min(int(vmem_bytes) + (8 << 20), 64 << 20),
        ),
    )(tile_tbl, adj, support, b2d)


# --------------------------------------------------------------------------
# GCN layer and forward pass
# --------------------------------------------------------------------------
def gcn_layer(x_pad, adj_pad, tile_tbl, w_pad, b_pad, *, plan, apply_relu,
              compute_dtype, out_dtype):
    """maybe_relu(adj @ (x @ W) + b) on padded, lane-dense operands."""
    support = _matmul_xw(x_pad, w_pad, tm=plan.tm_a, out_dtype=compute_dtype)
    return _adj_matmul(adj_pad, support, b_pad, tile_tbl,
                       tm=plan.tm_b, tk=plan.tk_b, apply_relu=apply_relu,
                       resident_support=plan.resident_support,
                       out_dtype=out_dtype)


def gcn_forward(x, adj_p, tile_tbl, params, *, plan, dropout_p=0.5,
                training=False, rng=None, compute_dtype=jnp.bfloat16):
    """Forward pass of GCN; adj_p/tile_tbl come from prepare_graph() (hoisted)."""
    n, nfeat, nhid = plan.n, plan.nfeat, plan.nhid
    n_pad, f_pad, h_pad = plan.n_pad, plan.f_pad, plan.h_pad

    def pad2(a, rows, cols):
        return jnp.pad(a, ((0, rows - a.shape[0]), (0, cols - a.shape[1])))

    x_p = pad2(x, n_pad, f_pad).astype(compute_dtype)
    w1_p = pad2(params["w1"], f_pad, h_pad).astype(compute_dtype)
    w2_p = pad2(params["w2"], h_pad, f_pad).astype(compute_dtype)
    b1_p = jnp.pad(params["b1"], (0, h_pad - nhid)).reshape(1, h_pad).astype(jnp.float32)
    b2_p = jnp.pad(params["b2"], (0, f_pad - nfeat)).reshape(1, f_pad).astype(jnp.float32)

    # Layer 1: h = relu(adj @ (x @ W1) + b1); kept in compute_dtype for layer 2.
    h_p = gcn_layer(x_p, adj_p, tile_tbl, w1_p, b1_p, plan=plan,
                    apply_relu=True, compute_dtype=compute_dtype,
                    out_dtype=compute_dtype)

    if training and dropout_p > 0.0:
        # TODO(synk): dropout runs as plain XLA (not a Pallas kernel); it
        # matches F.dropout(training=True) inverted-dropout semantics.
        if rng is None:
            raise ValueError("rng key required when training=True")
        keep = jax.random.bernoulli(rng, 1.0 - dropout_p, h_p.shape)
        h_p = jnp.where(keep, h_p.astype(jnp.float32) / (1.0 - dropout_p),
                        0.0).astype(compute_dtype)

    embeddings = h_p[:n, :nhid].astype(jnp.float32)

    # Layer 2: out = adj @ (h @ W2) + b2, final output in f32.
    out_p = gcn_layer(h_p, adj_p, tile_tbl, w2_p, b2_p, plan=plan,
                      apply_relu=False, compute_dtype=compute_dtype,
                      out_dtype=jnp.float32)
    return out_p[:n, :nfeat], embeddings


def init_params(key, nfeat, nhid):
    """Init mirroring GraphConvolution.reset_parameters (uniform +-1/sqrt(out))."""
    k1, k2, k3, k4 = jax.random.split(key, 4)
    std1 = 1.0 / jnp.sqrt(nhid)
    std2 = 1.0 / jnp.sqrt(nfeat)
    return {
        "w1": jax.random.uniform(k1, (nfeat, nhid), jnp.float32, -std1, std1),
        "b1": jax.random.uniform(k2, (nhid,), jnp.float32, -std1, std1),
        "w2": jax.random.uniform(k3, (nhid, nfeat), jnp.float32, -std2, std2),
        "b2": jax.random.uniform(k4, (nfeat,), jnp.float32, -std2, std2),
    }


if __name__ == "__main__":
    key = jax.random.PRNGKey(0)
    kx, kadj, kparams = jax.random.split(key, 3)

    N, NFEAT, NHID = 16, 32, 16  # small graph: 16 nodes, 32 features, 16 hidden
    x = jax.random.normal(kx, (N, NFEAT), jnp.float32)

    # Symmetric, row-normalized dense adjacency with self loops.
    a = (jax.random.uniform(kadj, (N, N)) > 0.7).astype(jnp.float32)
    a = jnp.maximum(a, a.T) + jnp.eye(N, dtype=jnp.float32)
    adj = a / jnp.sum(a, axis=1, keepdims=True)

    params = init_params(kparams, NFEAT, NHID)

    # Per-graph preprocessing hoisted out of the forward (run once, reused).
    plan = make_plan(N, NFEAT, NHID)
    adj_p, tile_tbl = prepare_graph(adj, plan)
    adj_p, tile_tbl = jax.block_until_ready((adj_p, tile_tbl))

    fwd = jax.jit(functools.partial(gcn_forward, plan=plan, dropout_p=0.5,
                                    training=False))
    out, emb = fwd(x, adj_p, tile_tbl, params)
    out, emb = jax.block_until_ready((out, emb))

    # Reference check in plain f32 JAX (kernel streams adj/activations in bf16,
    # accumulates in f32 -> tolerance matches bf16 input rounding).
    ref_h = jnp.maximum(adj @ (x @ params["w1"]) + params["b1"], 0.0)
    ref_out = adj @ (ref_h @ params["w2"]) + params["b2"]
    assert out.shape == (N, NFEAT)
    assert emb.shape == (N, NHID)
    assert jnp.allclose(out, ref_out, atol=5e-2, rtol=5e-2), (
        float(jnp.max(jnp.abs(out - ref_out))))
    assert jnp.allclose(emb, ref_h, atol=5e-2, rtol=5e-2)

    print("KERNEL_OK")
</pallas_src>

<mosaic_0001>
module attributes {stable_mosaic.version = 11 : i64} {
  func.func @_xw_kernel(%arg0: i32, %arg1: memref<128x128xbf16, #tpu.memory_space<vmem>>, %arg2: memref<128x128xbf16, #tpu.memory_space<vmem>>, %arg3: memref<128x128xbf16, #tpu.memory_space<vmem>>) attributes {dimension_semantics = [#tpu.dimension_semantics<parallel>], iteration_bounds = array<i64: 1>, scalar_prefetch = 0 : i64, scratch_operands = 0 : i64, tpu.core_type = #tpu.core_type<tc>, window_params = [{transform_indices = @transform_0, window_bounds = array<i64: 128, 128>}, {pipeline_mode = #tpu.pipeline_mode<synchronous>, transform_indices = @transform_1, window_bounds = array<i64: 128, 128>}, {transform_indices = @transform_2, window_bounds = array<i64: 128, 128>}]} {
    %c0 = arith.constant 0 : index
    %c0_0 = arith.constant 0 : index
    %0 = vector.load %arg1[%c0, %c0_0] : memref<128x128xbf16, #tpu.memory_space<vmem>>, vector<128x128xbf16>
    %c0_1 = arith.constant 0 : index
    %c0_2 = arith.constant 0 : index
    %1 = vector.load %arg2[%c0_1, %c0_2] : memref<128x128xbf16, #tpu.memory_space<vmem>>, vector<128x128xbf16>
    %cst = arith.constant dense<0.000000e+00> : vector<128x128xf32>
    %2 = tpu.matmul %0, %1, %cst {dimension_numbers = #tpu.dot_dimension_numbers<[1], [0], [0], [1], [0, 0, 1, 1], [], []>} : vector<128x128xbf16>, vector<128x128xbf16>, vector<128x128xf32> -> vector<128x128xf32>
    %3 = arith.truncf %2 : vector<128x128xf32> to vector<128x128xbf16>
    %c0_3 = arith.constant 0 : index
    %c0_4 = arith.constant 0 : index
    %4 = vector.load %arg3[%c0_3, %c0_4] : memref<128x128xbf16, #tpu.memory_space<vmem>>, vector<128x128xbf16>
    tpu.vector_store %arg3[%c0_3, %c0_4], %3 {strides = array<i32>} : memref<128x128xbf16, #tpu.memory_space<vmem>>, vector<128x128xbf16>,
    return
  }
  func.func @transform_0(%arg0: i32) -> (i32, i32) {
    %c0_i32 = arith.constant 0 : i32
    %c0_i32_0 = arith.constant 0 : i32
    return %arg0, %c0_i32 : i32, i32
  }
  func.func @transform_1(%arg0: i32) -> (i32, i32) {
    %c0_i32 = arith.constant 0 : i32
    %c0_i32_0 = arith.constant 0 : i32
    %c0_i32_1 = arith.constant 0 : i32
    return %c0_i32, %c0_i32_0 : i32, i32
  }
  func.func @transform_2(%arg0: i32) -> (i32, i32) {
    %c0_i32 = arith.constant 0 : i32
    %c0_i32_0 = arith.constant 0 : i32
    return %arg0, %c0_i32 : i32, i32
  }
}

module attributes {stable_mosaic.version = 11 : i64} {
  func.func @_adj_matmul_kernel(%arg0: i32, %arg1: i32, %arg2: memref<3x1xi32, #tpu.memory_space<smem>>, %arg3: memref<128x128xbf16, #tpu.memory_space<vmem>>, %arg4: memref<128x128xbf16, #tpu.memory_space<vmem>>, %arg5: memref<1x128xf32, #tpu.memory_space<vmem>>, %arg6: memref<128x128xf32, #tpu.memory_space<vmem>>, %arg7: memref<128x128xf32, #tpu.memory_space<vmem>>) attributes {dimension_semantics = [#tpu.dimension_semantics<parallel>, #tpu.dimension_semantics<arbitrary>], iteration_bounds = array<i64: 1, 1>, scalar_prefetch = 1 : i64, scratch_operands = 1 : i64, tpu.core_type = #tpu.core_type<tc>, window_params = [{transform_indices = @transform_0, window_bounds = array<i64: 128, 128>}, {pipeline_mode = #tpu.pipeline_mode<synchronous>, transform_indices = @transform_1, window_bounds = array<i64: 128, 128>}, {pipeline_mode = #tpu.pipeline_mode<synchronous>, transform_indices = @transform_2, window_bounds = array<i64: 1, 128>}, {transform_indices = @transform_3, window_bounds = array<i64: 128, 128>}]} {
    %c1_i32 = arith.constant 1 : i32
    %0 = arith.muli %arg0, %c1_i32 : i32
    %1 = arith.addi %0, %arg1 : i32
    %c0_i32 = arith.constant 0 : i32
    %2 = arith.cmpi eq, %arg1, %c0_i32 : i32
    %3 = arith.extui %2 : i1 to i32
    %c0_i32_0 = arith.constant 0 : i32
    %4 = arith.cmpi ne, %3, %c0_i32_0 : i32
    scf.if %4 {
      %cst = arith.constant 0.000000e+00 : f32
      %13 = vector.broadcast %cst : f32 to vector<128x128xf32>
      %c0_5 = arith.constant 0 : index
      %c0_6 = arith.constant 0 : index
      %14 = vector.load %arg7[%c0_5, %c0_6] : memref<128x128xf32, #tpu.memory_space<vmem>>, vector<128x128xf32>
      tpu.vector_store %arg7[%c0_5, %c0_6], %13 {strides = array<i32>} : memref<128x128xf32, #tpu.memory_space<vmem>>, vector<128x128xf32>,
    } else {
    }
    %c0 = arith.constant 0 : index
    %5 = arith.index_cast %1 : i32 to index
    %6 = memref.load %arg2[%c0, %5] : memref<3x1xi32, #tpu.memory_space<smem>>
    %c0_i32_1 = arith.constant 0 : i32
    %7 = arith.cmpi ne, %6, %c0_i32_1 : i32
    %8 = arith.extui %7 : i1 to i32
    %c0_i32_2 = arith.constant 0 : i32
    %9 = arith.cmpi ne, %8, %c0_i32_2 : i32
    scf.if %9 {
      %c128_i32 = arith.constant 128 : i32
      %13 = arith.muli %arg1, %c128_i32 : i32
      %14 = tpu.assume_multiple %13, 128 : i32
      %15 = arith.index_cast %14 : i32 to index
      %c0_5 = arith.constant 0 : index
      %16 = vector.load %arg4[%15, %c0_5] : memref<128x128xbf16, #tpu.memory_space<vmem>>, vector<128x128xbf16>
      %c0_6 = arith.constant 0 : index
      %c0_7 = arith.constant 0 : index
      %17 = vector.load %arg7[%c0_6, %c0_7] : memref<128x128xf32, #tpu.memory_space<vmem>>, vector<128x128xf32>
      %c0_8 = arith.constant 0 : index
      %c0_9 = arith.constant 0 : index
      %18 = vector.load %arg3[%c0_8, %c0_9] : memref<128x128xbf16, #tpu.memory_space<vmem>>, vector<128x128xbf16>
      %cst = arith.constant dense<0.000000e+00> : vector<128x128xf32>
      %19 = tpu.matmul %18, %16, %cst {dimension_numbers = #tpu.dot_dimension_numbers<[1], [0], [0], [1], [0, 0, 1, 1], [], []>} : vector<128x128xbf16>, vector<128x128xbf16>, vector<128x128xf32> -> vector<128x128xf32>
      %20 = arith.addf %17, %19 : vector<128x128xf32>
      %c0_10 = arith.constant 0 : index
      %c0_11 = arith.constant 0 : index
      %21 = vector.load %arg7[%c0_10, %c0_11] : memref<128x128xf32, #tpu.memory_space<vmem>>, vector<128x128xf32>
      tpu.vector_store %arg7[%c0_10, %c0_11], %20 {strides = array<i32>} : memref<128x128xf32, #tpu.memory_space<vmem>>, vector<128x128xf32>,
    } else {
    }
    %c0_i32_3 = arith.constant 0 : i32
    %10 = arith.cmpi eq, %arg1, %c0_i32_3 : i32
    %11 = arith.extui %10 : i1 to i32
    %c0_i32_4 = arith.constant 0 : i32
    %12 = arith.cmpi ne, %11, %c0_i32_4 : i32
    scf.if %12 {
      %c0_5 = arith.constant 0 : index
      %c0_6 = arith.constant 0 : index
      %13 = vector.load %arg7[%c0_5, %c0_6] : memref<128x128xf32, #tpu.memory_space<vmem>>, vector<128x128xf32>
      %c0_7 = arith.constant 0 : index
      %c0_8 = arith.constant 0 : index
      %14 = vector.load %arg5[%c0_7, %c0_8] : memref<1x128xf32, #tpu.memory_space<vmem>>, vector<1x128xf32>
      %15 = vector.broadcast %14 : vector<1x128xf32> to vector<128x128xf32>
      %16 = arith.addf %13, %15 : vector<128x128xf32>
      %c0_9 = arith.constant 0 : index
      %c0_10 = arith.constant 0 : index
      %17 = vector.load %arg6[%c0_9, %c0_10] : memref<128x128xf32, #tpu.memory_space<vmem>>, vector<128x128xf32>
      tpu.vector_store %arg6[%c0_9, %c0_10], %16 {strides = array<i32>} : memref<128x128xf32, #tpu.memory_space<vmem>>, vector<128x128xf32>,
    } else {
    }
    return
  }
  func.func @transform_0(%arg0: i32, %arg1: i32, %arg2: memref<3x1xi32, #tpu.memory_space<smem>>) -> (i32, i32) {
    %c1_i32 = arith.constant 1 : i32
    %0 = arith.muli %arg0, %c1_i32 : i32
    %1 = arith.addi %0, %arg1 : i32
    %c1 = arith.constant 1 : index
    %2 = arith.index_cast %1 : i32 to index
    %3 = memref.load %arg2[%c1, %2] : memref<3x1xi32, #tpu.memory_space<smem>>
    %c2 = arith.constant 2 : index
    %4 = arith.index_cast %1 : i32 to index
    %5 = memref.load %arg2[%c2, %4] : memref<3x1xi32, #tpu.memory_space<smem>>
    %c0_i32 = arith.constant 0 : i32
    return %3, %5 : i32, i32
  }
  func.func @transform_1(%arg0: i32, %arg1: i32, %arg2: memref<3x1xi32, #tpu.memory_space<smem>>) -> (i32, i32) {
    %c0_i32 = arith.constant 0 : i32
    %c0_i32_0 = arith.constant 0 : i32
    %c0_i32_1 = arith.constant 0 : i32
    return %c0_i32, %c0_i32_0 : i32, i32
  }
  func.func @transform_2(%arg0: i32, %arg1: i32, %arg2: memref<3x1xi32, #tpu.memory_space<smem>>) -> (i32, i32) {
    %c0_i32 = arith.constant 0 : i32
    %c0_i32_0 = arith.constant 0 : i32
    %c0_i32_1 = arith.constant 0 : i32
    return %c0_i32, %c0_i32_0 : i32, i32
  }
  func.func @transform_3(%arg0: i32, %arg1: i32, %arg2: memref<3x1xi32, #tpu.memory_space<smem>>) -> (i32, i32) {
    %c0_i32 = arith.constant 0 : i32
    %c0_i32_0 = arith.constant 0 : i32
    return %arg0, %c0_i32 : i32, i32
  }
}

module attributes {stable_mosaic.version = 11 : i64} {
  func.func @_adj_matmul_kernel(%arg0: i32, %arg1: i32, %arg2: memref<3x1xi32, #tpu.memory_space<smem>>, %arg3: memref<128x128xbf16, #tpu.memory_space<vmem>>, %arg4: memref<128x128xbf16, #tpu.memory_space<vmem>>, %arg5: memref<1x128xf32, #tpu.memory_space<vmem>>, %arg6: memref<128x128xbf16, #tpu.memory_space<vmem>>, %arg7: memref<128x128xf32, #tpu.memory_space<vmem>>) attributes {dimension_semantics = [#tpu.dimension_semantics<parallel>, #tpu.dimension_semantics<arbitrary>], iteration_bounds = array<i64: 1, 1>, scalar_prefetch = 1 : i64, scratch_operands = 1 : i64, tpu.core_type = #tpu.core_type<tc>, window_params = [{transform_indices = @transform_0, window_bounds = array<i64: 128, 128>}, {pipeline_mode = #tpu.pipeline_mode<synchronous>, transform_indices = @transform_1, window_bounds = array<i64: 128, 128>}, {pipeline_mode = #tpu.pipeline_mode<synchronous>, transform_indices = @transform_2, window_bounds = array<i64: 1, 128>}, {transform_indices = @transform_3, window_bounds = array<i64: 128, 128>}]} {
    %c1_i32 = arith.constant 1 : i32
    %0 = arith.muli %arg0, %c1_i32 : i32
    %1 = arith.addi %0, %arg1 : i32
    %c0_i32 = arith.constant 0 : i32
    %2 = arith.cmpi eq, %arg1, %c0_i32 : i32
    %3 = arith.extui %2 : i1 to i32
    %c0_i32_0 = arith.constant 0 : i32
    %4 = arith.cmpi ne, %3, %c0_i32_0 : i32
    scf.if %4 {
      %cst = arith.constant 0.000000e+00 : f32
      %13 = vector.broadcast %cst : f32 to vector<128x128xf32>
      %c0_5 = arith.constant 0 : index
      %c0_6 = arith.constant 0 : index
      %14 = vector.load %arg7[%c0_5, %c0_6] : memref<128x128xf32, #tpu.memory_space<vmem>>, vector<128x128xf32>
      tpu.vector_store %arg7[%c0_5, %c0_6], %13 {strides = array<i32>} : memref<128x128xf32, #tpu.memory_space<vmem>>, vector<128x128xf32>,
    } else {
    }
    %c0 = arith.constant 0 : index
    %5 = arith.index_cast %1 : i32 to index
    %6 = memref.load %arg2[%c0, %5] : memref<3x1xi32, #tpu.memory_space<smem>>
    %c0_i32_1 = arith.constant 0 : i32
    %7 = arith.cmpi ne, %6, %c0_i32_1 : i32
    %8 = arith.extui %7 : i1 to i32
    %c0_i32_2 = arith.constant 0 : i32
    %9 = arith.cmpi ne, %8, %c0_i32_2 : i32
    scf.if %9 {
      %c128_i32 = arith.constant 128 : i32
      %13 = arith.muli %arg1, %c128_i32 : i32
      %14 = tpu.assume_multiple %13, 128 : i32
      %15 = arith.index_cast %14 : i32 to index
      %c0_5 = arith.constant 0 : index
      %16 = vector.load %arg4[%15, %c0_5] : memref<128x128xbf16, #tpu.memory_space<vmem>>, vector<128x128xbf16>
      %c0_6 = arith.constant 0 : index
      %c0_7 = arith.constant 0 : index
      %17 = vector.load %arg7[%c0_6, %c0_7] : memref<128x128xf32, #tpu.memory_space<vmem>>, vector<128x128xf32>
      %c0_8 = arith.constant 0 : index
      %c0_9 = arith.constant 0 : index
      %18 = vector.load %arg3[%c0_8, %c0_9] : memref<128x128xbf16, #tpu.memory_space<vmem>>, vector<128x128xbf16>
      %cst = arith.constant dense<0.000000e+00> : vector<128x128xf32>
      %19 = tpu.matmul %18, %16, %cst {dimension_numbers = #tpu.dot_dimension_numbers<[1], [0], [0], [1], [0, 0, 1, 1], [], []>} : vector<128x128xbf16>, vector<128x128xbf16>, vector<128x128xf32> -> vector<128x128xf32>
      %20 = arith.addf %17, %19 : vector<128x128xf32>
      %c0_10 = arith.constant 0 : index
      %c0_11 = arith.constant 0 : index
      %21 = vector.load %arg7[%c0_10, %c0_11] : memref<128x128xf32, #tpu.memory_space<vmem>>, vector<128x128xf32>
      tpu.vector_store %arg7[%c0_10, %c0_11], %20 {strides = array<i32>} : memref<128x128xf32, #tpu.memory_space<vmem>>, vector<128x128xf32>,
    } else {
    }
    %c0_i32_3 = arith.constant 0 : i32
    %10 = arith.cmpi eq, %arg1, %c0_i32_3 : i32
    %11 = arith.extui %10 : i1 to i32
    %c0_i32_4 = arith.constant 0 : i32
    %12 = arith.cmpi ne, %11, %c0_i32_4 : i32
    scf.if %12 {
      %c0_5 = arith.constant 0 : index
      %c0_6 = arith.constant 0 : index
      %13 = vector.load %arg7[%c0_5, %c0_6] : memref<128x128xf32, #tpu.memory_space<vmem>>, vector<128x128xf32>
      %c0_7 = arith.constant 0 : index
      %c0_8 = arith.constant 0 : index
      %14 = vector.load %arg5[%c0_7, %c0_8] : memref<1x128xf32, #tpu.memory_space<vmem>>, vector<1x128xf32>
      %15 = vector.broadcast %14 : vector<1x128xf32> to vector<128x128xf32>
      %16 = arith.addf %13, %15 : vector<128x128xf32>
      %cst = arith.constant 0.000000e+00 : f32
      %17 = vector.broadcast %cst : f32 to vector<128x128xf32>
      %18 = arith.maximumf %16, %17 : vector<128x128xf32>
      %19 = arith.truncf %18 : vector<128x128xf32> to vector<128x128xbf16>
      %c0_9 = arith.constant 0 : index
      %c0_10 = arith.constant 0 : index
      %20 = vector.load %arg6[%c0_9, %c0_10] : memref<128x128xbf16, #tpu.memory_space<vmem>>, vector<128x128xbf16>
      tpu.vector_store %arg6[%c0_9, %c0_10], %19 {strides = array<i32>} : memref<128x128xbf16, #tpu.memory_space<vmem>>, vector<128x128xbf16>,
    } else {
    }
    return
  }
  func.func @transform_0(%arg0: i32, %arg1: i32, %arg2: memref<3x1xi32, #tpu.memory_space<smem>>) -> (i32, i32) {
    %c1_i32 = arith.constant 1 : i32
    %0 = arith.muli %arg0, %c1_i32 : i32
    %1 = arith.addi %0, %arg1 : i32
    %c1 = arith.constant 1 : index
    %2 = arith.index_cast %1 : i32 to index
    %3 = memref.load %arg2[%c1, %2] : memref<3x1xi32, #tpu.memory_space<smem>>
    %c2 = arith.constant 2 : index
    %4 = arith.index_cast %1 : i32 to index
    %5 = memref.load %arg2[%c2, %4] : memref<3x1xi32, #tpu.memory_space<smem>>
    %c0_i32 = arith.constant 0 : i32
    return %3, %5 : i32, i32
  }
  func.func @transform_1(%arg0: i32, %arg1: i32, %arg2: memref<3x1xi32, #tpu.memory_space<smem>>) -> (i32, i32) {
    %c0_i32 = arith.constant 0 : i32
    %c0_i32_0 = arith.constant 0 : i32
    %c0_i32_1 = arith.constant 0 : i32
    return %c0_i32, %c0_i32_0 : i32, i32
  }
  func.func @transform_2(%arg0: i32, %arg1: i32, %arg2: memref<3x1xi32, #tpu.memory_space<smem>>) -> (i32, i32) {
    %c0_i32 = arith.constant 0 : i32
    %c0_i32_0 = arith.constant 0 : i32
    %c0_i32_1 = arith.constant 0 : i32
    return %c0_i32, %c0_i32_0 : i32, i32
  }
  func.func @transform_3(%arg0: i32, %arg1: i32, %arg2: memref<3x1xi32, #tpu.memory_space<smem>>) -> (i32, i32) {
    %c0_i32 = arith.constant 0 : i32
    %c0_i32_0 = arith.constant 0 : i32
    return %arg0, %c0_i32 : i32, i32
  }
}

</mosaic_0001>

<llo_original>
// kernel: gcn_forward.4
$region0: #{gcn_forward.4}
  #allocation0 [shape = 'u32[]', space=smem, size = 0x4, offset = 0x4, fixed_abs, tag = 'smem constant byte address 0x4 - core index']
  #allocation1 [shape = 'u32[144,128]{1,0:T(1,128)}', space=vmem, size = 0x12000, scoped, tag = 'internal scratch']
  %s0 = inlined_call_operand.vmem [shape: bf16[128,128], index: 0, kind: input, shape index: {}]
  %s1 = inlined_call_operand.vmem [shape: bf16[128,128], index: 1, kind: input, shape index: {}]
  %s2 = inlined_call_operand.vmem [shape: bf16[128,128], index: 2, kind: output, shape index: {}]
  %s3 = sld [smem:[#allocation0]]
  $region18: #{gcn_forward.4} parent=0
    _
  %s5 = ssub.s32 1, %s3
  %s6 = scalar_select 0, %s5, %s3
  // Predicated region
  $region2: #{gcn_forward.4} parent=0 // pred_check
    _
  $region3: #{gcn_forward.4} parent=0 // pred_check_branch
    %8 = sbr.rel (0) target = $region5
  $region4: #{gcn_forward.4} parent=0 // pred_region
    _
  $region5: #{gcn_forward.4} parent=0 // pred_fallthru
    _
  // Predicated region
  $region6: #{gcn_forward.4} parent=0 // pred_check
    _
  $region7: #{gcn_forward.4} parent=0 // pred_check_branch
    %10 = sbr.rel (0) target = $region9
  $region8: #{gcn_forward.4} parent=0 // pred_region
    _
  $region9: #{gcn_forward.4} parent=0 // pred_fallthru
    _
  %v12 = vld [vmem:[%s0] sm:$0xf]
  %v13 = vld [vmem:[%s0 + $0x4] sm:$0xf]
  %v14 = vld [vmem:[%s0 + $0x8] sm:$0xf]
  %v15 = vld [vmem:[%s0 + $0xc] sm:$0xf]
  %v16 = vld [vmem:[%s0 + $0x10] sm:$0xf]
  %v17 = vld [vmem:[%s0 + $0x14] sm:$0xf]
  %v18 = vld [vmem:[%s0 + $0x18] sm:$0xf]
  %v19 = vld [vmem:[%s0 + $0x1c] sm:$0xf]
  %v20 = vld [vmem:[%s0 + $0x20] sm:$0xf]
  %v21 = vld [vmem:[%s0 + $0x24] sm:$0xf]
  %v22 = vld [vmem:[%s0 + $0x28] sm:$0xf]
  %v23 = vld [vmem:[%s0 + $0x2c] sm:$0xf]
  %v24 = vld [vmem:[%s0 + $0x30] sm:$0xf]
  %v25 = vld [vmem:[%s0 + $0x34] sm:$0xf]
  %v26 = vld [vmem:[%s0 + $0x38] sm:$0xf]
  %v27 = vld [vmem:[%s0 + $0x3c] sm:$0xf]
  %v28 = vld [vmem:[%s1] sm:$0xf]
  %v29 = vld [vmem:[%s1 + $0x4] sm:$0xf]
  %v30 = vld [vmem:[%s1 + $0x8] sm:$0xf]
  %v31 = vld [vmem:[%s1 + $0xc] sm:$0xf]
  %v32 = vld [vmem:[%s1 + $0x10] sm:$0xf]
  %v33 = vld [vmem:[%s1 + $0x14] sm:$0xf]
  %v34 = vld [vmem:[%s1 + $0x18] sm:$0xf]
  %v35 = vld [vmem:[%s1 + $0x1c] sm:$0xf]
  %v36 = vld [vmem:[%s1 + $0x20] sm:$0xf]
  %v37 = vld [vmem:[%s1 + $0x24] sm:$0xf]
  %v38 = vld [vmem:[%s1 + $0x28] sm:$0xf]
  %v39 = vld [vmem:[%s1 + $0x2c] sm:$0xf]
  %v40 = vld [vmem:[%s1 + $0x30] sm:$0xf]
  %v41 = vld [vmem:[%s1 + $0x34] sm:$0xf]
  %v42 = vld [vmem:[%s1 + $0x38] sm:$0xf]
  %v43 = vld [vmem:[%s1 + $0x3c] sm:$0xf]
  %v60 = vunpack.c.l.b16 %v12
  %v61 = vunpack.c.l.b16 %v13
  %v62 = vunpack.c.l.b16 %v14
  %v63 = vunpack.c.l.b16 %v15
  %v64 = vunpack.c.l.b16 %v16
  %v65 = vunpack.c.l.b16 %v17
  %v66 = vunpack.c.l.b16 %v18
  %v67 = vunpack.c.l.b16 %v19
  %v68 = vunpack.c.l.b16 %v20
  %v69 = vunpack.c.l.b16 %v21
  %v70 = vunpack.c.l.b16 %v22
  %v71 = vunpack.c.l.b16 %v23
  %v72 = vunpack.c.l.b16 %v24
  %v73 = vunpack.c.l.b16 %v25
  %v74 = vunpack.c.l.b16 %v26
  %v75 = vunpack.c.l.b16 %v27
  %v76 = vpack.c.b16 %v61, %v60
  %v77 = vpack.c.b16 %v63, %v62
  %v78 = vpack.c.b16 %v65, %v64
  %v79 = vpack.c.b16 %v67, %v66
  %v80 = vpack.c.b16 %v69, %v68
  %v81 = vpack.c.b16 %v71, %v70
  %v82 = vpack.c.b16 %v73, %v72
  %v83 = vpack.c.b16 %v75, %v74
  %v108 = vunpack.c.l.b16 %v28
  %v109 = vunpack.c.l.b16 %v29
  %v110 = vunpack.c.l.b16 %v30
  %v111 = vunpack.c.l.b16 %v31
  %v112 = vunpack.c.l.b16 %v32
  %v113 = vunpack.c.l.b16 %v33
  %v114 = vunpack.c.l.b16 %v34
  %v115 = vunpack.c.l.b16 %v35
  %v116 = vunpack.c.l.b16 %v36
  %v117 = vunpack.c.l.b16 %v37
  %v118 = vunpack.c.l.b16 %v38
  %v119 = vunpack.c.l.b16 %v39
  %v120 = vunpack.c.l.b16 %v40
  %v121 = vunpack.c.l.b16 %v41
  %v122 = vunpack.c.l.b16 %v42
  %v123 = vunpack.c.l.b16 %v43
  %v124 = vpack.c.b16 %v109, %v108
  %v125 = vpack.c.b16 %v111, %v110
  %v126 = vpack.c.b16 %v113, %v112
  %v127 = vpack.c.b16 %v115, %v114
  %v128 = vpack.c.b16 %v117, %v116
  %v129 = vpack.c.b16 %v119, %v118
  %v130 = vpack.c.b16 %v121, %v120
  %v131 = vpack.c.b16 %v123, %v122
  %140 = vmatprep.subr.bf16.mxu0 0
  %141 = vmatpush1.bf16.msra.mxu0 %v124
  %142 = vmatprep.subr.bf16.mxu0 0
  %143 = vmatpush1.bf16.msra.mxu0 %v125
  %144 = vmatprep.subr.bf16.mxu0 0
  %145 = vmatpush1.bf16.msra.mxu0 %v126
  %146 = vmatprep.subr.bf16.mxu0 0
  %147 = vmatpush1.bf16.msra.mxu0 %v127
  %148 = vmatprep.subr.bf16.mxu0 0
  %149 = vmatpush1.bf16.msra.mxu0 %v128
  %150 = vmatprep.subr.bf16.mxu0 0
  %151 = vmatpush1.bf16.msra.mxu0 %v129
  %152 = vmatprep.subr.bf16.mxu0 0
  %153 = vmatpush1.bf16.msra.mxu0 %v130
  %154 = vmatprep.subr.bf16.mxu0 0
  %155 = vmatpush1.bf16.msra.mxu0 %v131
  %156 = vmatprep.subr.bf16.mxu0 0
  %157 = vmatpush1.bf16.msra.mxu0 0
  %158 = vmatprep.subr.bf16.mxu0 0
  %159 = vmatpush1.bf16.msra.mxu0 0
  %160 = vmatprep.subr.bf16.mxu0 0
  %161 = vmatpush1.bf16.msra.mxu0 0
  %162 = vmatprep.subr.bf16.mxu0 0
  %163 = vmatpush1.bf16.msra.mxu0 0
  %164 = vmatprep.subr.bf16.mxu0 0
  %165 = vmatpush1.bf16.msra.mxu0 0
  %166 = vmatprep.subr.bf16.mxu0 0
  %167 = vmatpush1.bf16.msra.mxu0 0
  %168 = vmatprep.subr.bf16.mxu0 0
  %169 = vmatpush1.bf16.msra.mxu0 0
  %170 = vmatprep.subr.bf16.mxu0 0
  %171 = vmatpush1.bf16.msra.mxu0 0
  %172 = vmatprep.mubr.bf16.mxu0 0
  %173 = vmatmul.mubr.bf16.gmra.mrb[0].mxu0 %v76
  %v174 = vpop.f32.mrb[0].mxu0
  %v175 = vadd.f32 0.0, %v174
  %v176 = vpop.f32.mrb[0].mxu0
  %v177 = vpop.f32.mrb[0].mxu0
  %v178 = vadd.f32 0.0, %v177
  %v179 = vpop.f32.mrb[0].mxu0
  %180 = vmatprep.mubr.bf16.mxu0 0
  %181 = vmatmul.mubr.bf16.gmra.mrb[0].mxu0 %v77
  %v182 = vpop.f32.mrb[0].mxu0
  %v183 = vadd.f32 0.0, %v182
  %v184 = vpop.f32.mrb[0].mxu0
  %v185 = vpop.f32.mrb[0].mxu0
  %v186 = vadd.f32 0.0, %v185
  %v187 = vpop.f32.mrb[0].mxu0
  %188 = vmatprep.mubr.bf16.mxu0 0
  %189 = vmatmul.mubr.bf16.gmra.mrb[0].mxu0 %v78
  %v190 = vpop.f32.mrb[0].mxu0
  %v191 = vadd.f32 0.0, %v190
  %v192 = vpop.f32.mrb[0].mxu0
  %v193 = vpop.f32.mrb[0].mxu0
  %v194 = vadd.f32 0.0, %v193
  %v195 = vpop.f32.mrb[0].mxu0
  %196 = vmatprep.mubr.bf16.mxu0 0
  %197 = vmatmul.mubr.bf16.gmra.mrb[0].mxu0 %v79
  %v198 = vpop.f32.mrb[0].mxu0
  %v199 = vadd.f32 0.0, %v198
  %v200 = vpop.f32.mrb[0].mxu0
  %v201 = vpop.f32.mrb[0].mxu0
  %v202 = vadd.f32 0.0, %v201
  %v203 = vpop.f32.mrb[0].mxu0
  %204 = vmatprep.mubr.bf16.mxu0 0
  %205 = vmatmul.mubr.bf16.gmra.mrb[0].mxu0 %v80
  %v206 = vpop.f32.mrb[0].mxu0
  %v207 = vadd.f32 0.0, %v206
  %v208 = vpop.f32.mrb[0].mxu0
  %v209 = vpop.f32.mrb[0].mxu0
  %v210 = vadd.f32 0.0, %v209
  %v211 = vpop.f32.mrb[0].mxu0
  %212 = vmatprep.mubr.bf16.mxu0 0
  %213 = vmatmul.mubr.bf16.gmra.mrb[0].mxu0 %v81
  %v214 = vpop.f32.mrb[0].mxu0
  %v215 = vadd.f32 0.0, %v214
  %v216 = vpop.f32.mrb[0].mxu0
  %v217 = vpop.f32.mrb[0].mxu0
  %v218 = vadd.f32 0.0, %v217
  %v219 = vpop.f32.mrb[0].mxu0
  %220 = vmatprep.mubr.bf16.mxu0 0
  %221 = vmatmul.mubr.bf16.gmra.mrb[0].mxu0 %v82
  %v222 = vpop.f32.mrb[0].mxu0
  %v223 = vadd.f32 0.0, %v222
  %v224 = vpop.f32.mrb[0].mxu0
  %v225 = vpop.f32.mrb[0].mxu0
  %v226 = vadd.f32 0.0, %v225
  %v227 = vpop.f32.mrb[0].mxu0
  %228 = vmatprep.mubr.bf16.mxu0 0
  %229 = vmatmul.mubr.bf16.gmra.mrb[0].mxu0 %v83
  %v230 = vpop.f32.mrb[0].mxu0
  %v231 = vadd.f32 0.0, %v230
  %v232 = vpop.f32.mrb[0].mxu0
  %v233 = vpop.f32.mrb[0].mxu0
  %v234 = vadd.f32 0.0, %v233
  %v235 = vpop.f32.mrb[0].mxu0
  %236 = vdwg.mxu0
  %v237 = vpack.c.bf16 %v178, %v175
  %v238 = vpack.c.bf16 %v186, %v183
  %v239 = vpack.c.bf16 %v194, %v191
  %v240 = vpack.c.bf16 %v202, %v199
  %v241 = vpack.c.bf16 %v210, %v207
  %v242 = vpack.c.bf16 %v218, %v215
  %v243 = vpack.c.bf16 %v226, %v223
  %v244 = vpack.c.bf16 %v234, %v231
  %v253 = vunpack.c.l.b16 %v237
  %v254 = vunpack.c.h.b16 %v237
  %v255 = vunpack.c.l.b16 %v238
  %v256 = vunpack.c.h.b16 %v238
  %v257 = vunpack.c.l.b16 %v239
  %v258 = vunpack.c.h.b16 %v239
  %v259 = vunpack.c.l.b16 %v240
  %v260 = vunpack.c.h.b16 %v240
  %v261 = vunpack.c.l.b16 %v241
  %v262 = vunpack.c.h.b16 %v241
  %v263 = vunpack.c.l.b16 %v242
  %v264 = vunpack.c.h.b16 %v242
  %v265 = vunpack.c.l.b16 %v243
  %v266 = vunpack.c.h.b16 %v243
  %v267 = vunpack.c.l.b16 %v244
  %v268 = vunpack.c.h.b16 %v244
  %v269 = vpack.c.b16 %v253, %v253
  %v270 = vpack.c.b16 %v254, %v254
  %v271 = vpack.c.b16 %v255, %v255
  %v272 = vpack.c.b16 %v256, %v256
  %v273 = vpack.c.b16 %v257, %v257
  %v274 = vpack.c.b16 %v258, %v258
  %v275 = vpack.c.b16 %v259, %v259
  %v276 = vpack.c.b16 %v260, %v260
  %v277 = vpack.c.b16 %v261, %v261
  %v278 = vpack.c.b16 %v262, %v262
  %v279 = vpack.c.b16 %v263, %v263
  %v280 = vpack.c.b16 %v264, %v264
  %v281 = vpack.c.b16 %v265, %v265
  %v282 = vpack.c.b16 %v266, %v266
  %v283 = vpack.c.b16 %v267, %v267
  %v284 = vpack.c.b16 %v268, %v268
  %301 = vst [vmem:[%s2] sm:$0xf] %v269
  %302 = vst [vmem:[%s2 + $0x4] sm:$0xf] %v270
  %303 = vst [vmem:[%s2 + $0x8] sm:$0xf] %v271
  %304 = vst [vmem:[%s2 + $0xc] sm:$0xf] %v272
  %305 = vst [vmem:[%s2 + $0x10] sm:$0xf] %v273
  %306 = vst [vmem:[%s2 + $0x14] sm:$0xf] %v274
  %307 = vst [vmem:[%s2 + $0x18] sm:$0xf] %v275
  %308 = vst [vmem:[%s2 + $0x1c] sm:$0xf] %v276
  %309 = vst [vmem:[%s2 + $0x20] sm:$0xf] %v277
  %310 = vst [vmem:[%s2 + $0x24] sm:$0xf] %v278
  %311 = vst [vmem:[%s2 + $0x28] sm:$0xf] %v279
  %312 = vst [vmem:[%s2 + $0x2c] sm:$0xf] %v280
  %313 = vst [vmem:[%s2 + $0x30] sm:$0xf] %v281
  %314 = vst [vmem:[%s2 + $0x34] sm:$0xf] %v282
  %315 = vst [vmem:[%s2 + $0x38] sm:$0xf] %v283
  %316 = vst [vmem:[%s2 + $0x3c] sm:$0xf] %v284
  // Predicated region
  $region10: #{gcn_forward.4} parent=0 // pred_check
    _
  $region11: #{gcn_forward.4} parent=0 // pred_check_branch
    %318 = sbr.rel (0) target = $region13
  $region12: #{gcn_forward.4} parent=0 // pred_region
    _
  $region13: #{gcn_forward.4} parent=0 // pred_fallthru
    _
  // Predicated region
  $region14: #{gcn_forward.4} parent=0 // pred_check
    _
  $region15: #{gcn_forward.4} parent=0 // pred_check_branch
    %320 = sbr.rel (0) target = $region17
  $region16: #{gcn_forward.4} parent=0 // pred_region
    _
  $region17: #{gcn_forward.4} parent=0 // pred_fallthru
    _

// kernel: gcn_forward.7
$region0: #{gcn_forward.7}
  #allocation0 [shape = 'u32[]', space=smem, size = 0x4, offset = 0x4, fixed_abs, tag = 'smem constant byte address 0x4 - core index']
  #allocation1 [shape = 'u32[144,128]{1,0:T(1,128)}', space=vmem, size = 0x12000, scoped, tag = 'internal scratch']
  #allocation2 [shape = 'f32[128,128]{1,0:T(8,128)}', space=vmem, size = 0x10000, scoped, tag = 'scratch operand']
  #allocation3 [shape = 's32[1]{0}', space=sflag, size = 0x4, scoped, tag = 'scoped memory for gcn_forward.7']
  #allocation4 [shape = 'u8[2048]{0}', space=smem, size = 0x800, scoped, tag = 'prefetched SMEM operand 0']
  %s0 = inlined_call_operand.vmem [shape: s32[3,1], index: 0, kind: input, shape index: {}]
  %s1 = inlined_call_operand.vmem [shape: bf16[128,128], index: 1, kind: input, shape index: {}]
  %s2 = inlined_call_operand.vmem [shape: bf16[128,128], index: 2, kind: input, shape index: {}]
  %s3 = inlined_call_operand.vmem [shape: f32[1,128], index: 3, kind: input, shape index: {}]
  %s4 = inlined_call_operand.vmem [shape: f32[128,128], index: 4, kind: output, shape index: {}]
  %s5 = sld [smem:[#allocation0]]
  $region34: #{gcn_forward.7} parent=0
    _
  %s7 = ssub.s32 1, %s5
  %s8 = scalar_select 0, %s7, %s5
  %s9 = sshll.u32 %s0, 4
  %s10 = int_to_ptr.vmem [resolvable:$true] %s9
  %12 = dma.vmem_to_smem %s10, 64, [#allocation4], [#allocation3]
  %13 = dma.done [#allocation3], 64
  %14 = sfence
  // Predicated region
  $region2: #{gcn_forward.7} parent=0 // pred_check
    _
  $region3: #{gcn_forward.7} parent=0 // pred_check_branch
    %16 = sbr.rel (0) target = $region5
  $region4: #{gcn_forward.7} parent=0 // pred_region
    %s17 = sadd.s32 0, 0
    %s18 = sshra.s32 %s17, 7
    %s19 = sand.u32 %s17, 127
    %s20 = sadd.s32 %s18, 1
    %s21 = smul.u32 %s20, 128
    %s22 = sshra.s32 %s17, 7
    %s23 = sand.u32 %s17, 127
    %s24 = sadd.s32 %s21, %s23
    %s25 = sld [smem:[#allocation4 + %s24]]
    %s26 = sadd.s32 %s18, 2
    %s27 = smul.u32 %s26, 128
    %s28 = sadd.s32 %s27, %s23
    %s29 = sld [smem:[#allocation4 + %s28]]
    %s30 = smul.u32 16, %s25
    %p31 = scmp.lt.s32.totalorder %s30, 15
    %s32 = scalar_select %p31, %s30, 15
    %p33 = scmp.lt.s32.totalorder %s29, 0
    %s34 = scalar_select %p33, %s29, 0
    %s35 = sadd.s32 %s34, %s32
    %s36 = smul.addr %s35, 4
    %s37 = scalar_lea.vmem %s1, %s36
    %s38 = sadd.s32 0, 0
    %s39 = sshra.s32 %s38, 7
    %s40 = sand.u32 %s38, 127
    %s41 = sadd.s32 %s39, 1
    %s42 = smul.u32 %s41, 128
    %s43 = sshra.s32 %s38, 7
    %s44 = sand.u32 %s38, 127
    %s45 = sadd.s32 %s42, %s44
    %s46 = sld [smem:[#allocation4 + %s45]]
    %s47 = sadd.s32 %s39, 2
    %s48 = smul.u32 %s47, 128
    %s49 = sadd.s32 %s48, %s44
    %s50 = sld [smem:[#allocation4 + %s49]]
    %s51 = smul.u32 16, %s46
  $region5: #{gcn_forward.7} parent=0 // pred_fallthru
    _
  // Predicated region
  $region6: #{gcn_forward.7} parent=0 // pred_check
    _
  $region7: #{gcn_forward.7} parent=0 // pred_check_branch
    %53 = sbr.rel (0) target = $region9
  $region8: #{gcn_forward.7} parent=0 // pred_region
    _
  $region9: #{gcn_forward.7} parent=0 // pred_fallthru
    _
  // Predicated region
  $region10: #{gcn_forward.7} parent=0 // pred_check
    _
  $region11: #{gcn_forward.7} parent=0 // pred_check_branch
    %55 = sbr.rel (0) target = $region13
  $region12: #{gcn_forward.7} parent=0 // pred_region
    _
  $region13: #{gcn_forward.7} parent=0 // pred_fallthru
    _
  %s56 = sadd.s32 0, 0
  %s57 = sshra.s32 %s56, 7
  %s58 = sand.u32 %s56, 127
  %s59 = sadd.s32 %s57, 1
  %s60 = smul.u32 %s59, 128
  %s61 = sshra.s32 %s56, 7
  %s62 = sand.u32 %s56, 127
  %s63 = sadd.s32 %s60, %s62
  %s64 = sld [smem:[#allocation4 + %s63]]
  %s65 = sadd.s32 %s57, 2
  %s66 = smul.u32 %s65, 128
  %s67 = sadd.s32 %s66, %s62
  %s68 = sld [smem:[#allocation4 + %s67]]
  %s69 = smul.u32 16, %s64
  %p70 = scmp.lt.s32.totalorder %s69, 15
  %s71 = scalar_select %p70, %s69, 15
  %p72 = scmp.lt.s32.totalorder %s68, 0
  %s73 = scalar_select %p72, %s68, 0
  %s74 = sadd.s32 %s73, %s71
  %s75 = smul.addr %s74, 4
  %s76 = scalar_lea.vmem %s1, %s75
  %s77 = sadd.s32 0, 0
  %s78 = sshra.s32 %s77, 7
  %s79 = sand.u32 %s77, 127
  %s80 = sadd.s32 %s78, 1
  %s81 = smul.u32 %s80, 128
  %s82 = sshra.s32 %s77, 7
  %s83 = sand.u32 %s77, 127
  %s84 = sadd.s32 %s81, %s83
  %s85 = sld [smem:[#allocation4 + %s84]]
  %s86 = sadd.s32 %s78, 2
  %s87 = smul.u32 %s86, 128
  %s88 = sadd.s32 %s87, %s83
  %s89 = sld [smem:[#allocation4 + %s88]]
  %s90 = smul.u32 16, %s85
  %p91 = scmp.lt.s32.totalorder %s90, 15
  %s92 = scalar_select %p91, %s90, 15
  %p93 = scmp.lt.s32.totalorder %s89, 0
  %s94 = scalar_select %p93, %s89, 0
  %s95 = sadd.s32 %s94, %s92
  %s96 = smul.addr %s95, 4
  %s97 = scalar_lea.vmem %s1, %s96
  %s98 = sadd.s32 0, 0
  %s99 = sshra.s32 %s98, 7
  %s100 = sand.u32 %s98, 127
  %s101 = sadd.s32 %s99, 1
  %s102 = smul.u32 %s101, 128
  %s103 = sshra.s32 %s98, 7
  %s104 = sand.u32 %s98, 127
  %s105 = sadd.s32 %s102, %s104
  %s106 = sld [smem:[#allocation4 + %s105]]
  %s107 = sadd.s32 %s99, 2
  %s108 = smul.u32 %s107, 128
  %s109 = sadd.s32 %s108, %s104
  %s110 = sld [smem:[#allocation4 + %s109]]
  %s111 = smul.u32 16, %s106
  %s113 = sadd.s32 0, 0
  %p114 = scmp.eq.s32.totalorder 0, 0
  // Predicated region
  $region14: #{gcn_forward.7} parent=0 // pred_check
    %p115 = pneg %p114
  $region15: #{gcn_forward.7} parent=0 // pred_check_branch
    %117 = sbr.rel (%p115) target = $region17
  $region16: #{gcn_forward.7} parent=0 // pred_region
    %118 = vst [vmem:[#allocation2] sm:$0xff] 0.0
    %119 = vst [vmem:[#allocation2 + $0x8] sm:$0xff] 0.0
    %120 = vst [vmem:[#allocation2 + $0x10] sm:$0xff] 0.0
    %121 = vst [vmem:[#allocation2 + $0x18] sm:$0xff] 0.0
    %122 = vst [vmem:[#allocation2 + $0x20] sm:$0xff] 0.0
    %123 = vst [vmem:[#allocation2 + $0x28] sm:$0xff] 0.0
    %124 = vst [vmem:[#allocation2 + $0x30] sm:$0xff] 0.0
    %125 = vst [vmem:[#allocation2 + $0x38] sm:$0xff] 0.0
    %126 = vst [vmem:[#allocation2 + $0x40] sm:$0xff] 0.0
    %127 = vst [vmem:[#allocation2 + $0x48] sm:$0xff] 0.0
    %128 = vst [vmem:[#allocation2 + $0x50] sm:$0xff] 0.0
    %129 = vst [vmem:[#allocation2 + $0x58] sm:$0xff] 0.0
    %130 = vst [vmem:[#allocation2 + $0x60] sm:$0xff] 0.0
    %131 = vst [vmem:[#allocation2 + $0x68] sm:$0xff] 0.0
    %132 = vst [vmem:[#allocation2 + $0x70] sm:$0xff] 0.0
    %133 = vst [vmem:[#allocation2 + $0x78] sm:$0xff] 0.0
  $region17: #{gcn_forward.7} parent=0 // pred_fallthru
    _
  %s134 = sld [smem:[#allocation4 + %s113]]
  %p135 = scmp.ne.s32.totalorder %s134, 0
  // Predicated region
  $region18: #{gcn_forward.7} parent=0 // pred_check
    %p136 = pneg %p135
  $region19: #{gcn_forward.7} parent=0 // pred_check_branch
    %138 = sbr.rel (%p136) target = $region21
  $region20: #{gcn_forward.7} parent=0 // pred_region
    %s139 = smul.u32 0, 128
    %s140 = sshra.s32 %s139, 3
    %s141 = sand.u32 %s139, 7
    %s142 = smul.addr %s140, 4
    %s143 = scalar_lea.vmem %s2, %s142
    %v144 = vld [vmem:[%s143] sm:$0xf]
    %v145 = vld [vmem:[%s143 + $0x4] sm:$0xf]
    %v146 = vld [vmem:[%s143 + $0x8] sm:$0xf]
    %v147 = vld [vmem:[%s143 + $0xc] sm:$0xf]
    %v148 = vld [vmem:[%s143 + $0x10] sm:$0xf]
    %v149 = vld [vmem:[%s143 + $0x14] sm:$0xf]
    %v150 = vld [vmem:[%s143 + $0x18] sm:$0xf]
    %v151 = vld [vmem:[%s143 + $0x1c] sm:$0xf]
    %v152 = vld [vmem:[%s143 + $0x20] sm:$0xf]
    %v153 = vld [vmem:[%s143 + $0x24] sm:$0xf]
    %v154 = vld [vmem:[%s143 + $0x28] sm:$0xf]
    %v155 = vld [vmem:[%s143 + $0x2c] sm:$0xf]
    %v156 = vld [vmem:[%s143 + $0x30] sm:$0xf]
    %v157 = vld [vmem:[%s143 + $0x34] sm:$0xf]
    %v158 = vld [vmem:[%s143 + $0x38] sm:$0xf]
    %v159 = vld [vmem:[%s143 + $0x3c] sm:$0xf]
    %v160 = vld [vmem:[#allocation2] sm:$0xff]
    %v161 = vld [vmem:[#allocation2 + $0x8] sm:$0xff]
    %v162 = vld [vmem:[#allocation2 + $0x10] sm:$0xff]
    %v163 = vld [vmem:[#allocation2 + $0x18] sm:$0xff]
    %v164 = vld [vmem:[#allocation2 + $0x20] sm:$0xff]
    %v165 = vld [vmem:[#allocation2 + $0x28] sm:$0xff]
    %v166 = vld [vmem:[#allocation2 + $0x30] sm:$0xff]
    %v167 = vld [vmem:[#allocation2 + $0x38] sm:$0xff]
    %v168 = vld [vmem:[#allocation2 + $0x40] sm:$0xff]
    %v169 = vld [vmem:[#allocation2 + $0x48] sm:$0xff]
    %v170 = vld [vmem:[#allocation2 + $0x50] sm:$0xff]
    %v171 = vld [vmem:[#allocation2 + $0x58] sm:$0xff]
    %v172 = vld [vmem:[#allocation2 + $0x60] sm:$0xff]
    %v173 = vld [vmem:[#allocation2 + $0x68] sm:$0xff]
    %v174 = vld [vmem:[#allocation2 + $0x70] sm:$0xff]
    %v175 = vld [vmem:[#allocation2 + $0x78] sm:$0xff]
    %v176 = vld [vmem:[%s97] sm:$0xf]
    %v177 = vld [vmem:[%s97 + $0x4] sm:$0xf]
    %v178 = vld [vmem:[%s97 + $0x8] sm:$0xf]
    %v179 = vld [vmem:[%s97 + $0xc] sm:$0xf]
    %v180 = vld [vmem:[%s97 + $0x10] sm:$0xf]
    %v181 = vld [vmem:[%s97 + $0x14] sm:$0xf]
    %v182 = vld [vmem:[%s97 + $0x18] sm:$0xf]
    %v183 = vld [vmem:[%s97 + $0x1c] sm:$0xf]
    %v184 = vld [vmem:[%s97 + $0x20] sm:$0xf]
    %v185 = vld [vmem:[%s97 + $0x24] sm:$0xf]
    %v186 = vld [vmem:[%s97 + $0x28] sm:$0xf]
    %v187 = vld [vmem:[%s97 + $0x2c] sm:$0xf]
    %v188 = vld [vmem:[%s97 + $0x30] sm:$0xf]
    %v189 = vld [vmem:[%s97 + $0x34] sm:$0xf]
    %v190 = vld [vmem:[%s97 + $0x38] sm:$0xf]
    %v191 = vld [vmem:[%s97 + $0x3c] sm:$0xf]
    %v208 = vunpack.c.l.b16 %v176
    %v209 = vunpack.c.l.b16 %v177
    %v210 = vunpack.c.l.b16 %v178
    %v211 = vunpack.c.l.b16 %v179
    %v212 = vunpack.c.l.b16 %v180
    %v213 = vunpack.c.l.b16 %v181
    %v214 = vunpack.c.l.b16 %v182
    %v215 = vunpack.c.l.b16 %v183
    %v216 = vunpack.c.l.b16 %v184
    %v217 = vunpack.c.l.b16 %v185
    %v218 = vunpack.c.l.b16 %v186
    %v219 = vunpack.c.l.b16 %v187
    %v220 = vunpack.c.l.b16 %v188
    %v221 = vunpack.c.l.b16 %v189
    %v222 = vunpack.c.l.b16 %v190
    %v223 = vunpack.c.l.b16 %v191
    %v224 = vpack.c.b16 %v209, %v208
    %v225 = vpack.c.b16 %v211, %v210
    %v226 = vpack.c.b16 %v213, %v212
    %v227 = vpack.c.b16 %v215, %v214
    %v228 = vpack.c.b16 %v217, %v216
    %v229 = vpack.c.b16 %v219, %v218
    %v230 = vpack.c.b16 %v221, %v220
    %v231 = vpack.c.b16 %v223, %v222
    %v256 = vunpack.c.l.b16 %v144
    %v257 = vunpack.c.l.b16 %v145
    %v258 = vunpack.c.l.b16 %v146
    %v259 = vunpack.c.l.b16 %v147
    %v260 = vunpack.c.l.b16 %v148
    %v261 = vunpack.c.l.b16 %v149
    %v262 = vunpack.c.l.b16 %v150
    %v263 = vunpack.c.l.b16 %v151
    %v264 = vunpack.c.l.b16 %v152
    %v265 = vunpack.c.l.b16 %v153
    %v266 = vunpack.c.l.b16 %v154
    %v267 = vunpack.c.l.b16 %v155
    %v268 = vunpack.c.l.b16 %v156
    %v269 = vunpack.c.l.b16 %v157
    %v270 = vunpack.c.l.b16 %v158
    %v271 = vunpack.c.l.b16 %v159
    %v272 = vpack.c.b16 %v257, %v256
    %v273 = vpack.c.b16 %v259, %v258
    %v274 = vpack.c.b16 %v261, %v260
    %v275 = vpack.c.b16 %v263, %v262
    %v276 = vpack.c.b16 %v265, %v264
    %v277 = vpack.c.b16 %v267, %v266
    %v278 = vpack.c.b16 %v269, %v268
    %v279 = vpack.c.b16 %v271, %v270
    %288 = vmatprep.subr.bf16.mxu0 0
    %289 = vmatpush1.bf16.msra.mxu0 %v272
    %290 = vmatprep.subr.bf16.mxu0 0
    %291 = vmatpush1.bf16.msra.mxu0 %v273
    %292 = vmatprep.subr.bf16.mxu0 0
    %293 = vmatpush1.bf16.msra.mxu0 %v274
    %294 = vmatprep.subr.bf16.mxu0 0
    %295 = vmatpush1.bf16.msra.mxu0 %v275
    %296 = vmatprep.subr.bf16.mxu0 0
    %297 = vmatpush1.bf16.msra.mxu0 %v276
    %298 = vmatprep.subr.bf16.mxu0 0
    %299 = vmatpush1.bf16.msra.mxu0 %v277
    %300 = vmatprep.subr.bf16.mxu0 0
    %301 = vmatpush1.bf16.msra.mxu0 %v278
    %302 = vmatprep.subr.bf16.mxu0 0
    %303 = vmatpush1.bf16.msra.mxu0 %v279
    %304 = vmatprep.subr.bf16.mxu0 0
    %305 = vmatpush1.bf16.msra.mxu0 0
    %306 = vmatprep.subr.bf16.mxu0 0
    %307 = vmatpush1.bf16.msra.mxu0 0
    %308 = vmatprep.subr.bf16.mxu0 0
    %309 = vmatpush1.bf16.msra.mxu0 0
    %310 = vmatprep.subr.bf16.mxu0 0
    %311 = vmatpush1.bf16.msra.mxu0 0
    %312 = vmatprep.subr.bf16.mxu0 0
    %313 = vmatpush1.bf16.msra.mxu0 0
    %314 = vmatprep.subr.bf16.mxu0 0
    %315 = vmatpush1.bf16.msra.mxu0 0
    %316 = vmatprep.subr.bf16.mxu0 0
    %317 = vmatpush1.bf16.msra.mxu0 0
    %318 = vmatprep.subr.bf16.mxu0 0
    %319 = vmatpush1.bf16.msra.mxu0 0
    %320 = vmatprep.mubr.bf16.mxu0 0
    %321 = vmatmul.mubr.bf16.gmra.mrb[0].mxu0 %v224
    %v322 = vpop.f32.mrb[0].mxu0
    %v323 = vadd.f32 0.0, %v322
    %v324 = vpop.f32.mrb[0].mxu0
    %v325 = vpop.f32.mrb[0].mxu0
    %v326 = vadd.f32 0.0, %v325
    %v327 = vpop.f32.mrb[0].mxu0
    %328 = vmatprep.mubr.bf16.mxu0 0
    %329 = vmatmul.mubr.bf16.gmra.mrb[0].mxu0 %v225
    %v330 = vpop.f32.mrb[0].mxu0
    %v331 = vadd.f32 0.0, %v330
    %v332 = vpop.f32.mrb[0].mxu0
    %v333 = vpop.f32.mrb[0].mxu0
    %v334 = vadd.f32 0.0, %v333
    %v335 = vpop.f32.mrb[0].mxu0
    %336 = vmatprep.mubr.bf16.mxu0 0
    %337 = vmatmul.mubr.bf16.gmra.mrb[0].mxu0 %v226
    %v338 = vpop.f32.mrb[0].mxu0
    %v339 = vadd.f32 0.0, %v338
    %v340 = vpop.f32.mrb[0].mxu0
    %v341 = vpop.f32.mrb[0].mxu0
    %v342 = vadd.f32 0.0, %v341
    %v343 = vpop.f32.mrb[0].mxu0
    %344 = vmatprep.mubr.bf16.mxu0 0
    %345 = vmatmul.mubr.bf16.gmra.mrb[0].mxu0 %v227
    %v346 = vpop.f32.mrb[0].mxu0
    %v347 = vadd.f32 0.0, %v346
    %v348 = vpop.f32.mrb[0].mxu0
    %v349 = vpop.f32.mrb[0].mxu0
    %v350 = vadd.f32 0.0, %v349
    %v351 = vpop.f32.mrb[0].mxu0
    %352 = vmatprep.mubr.bf16.mxu0 0
    %353 = vmatmul.mubr.bf16.gmra.mrb[0].mxu0 %v228
    %v354 = vpop.f32.mrb[0].mxu0
    %v355 = vadd.f32 0.0, %v354
    %v356 = vpop.f32.mrb[0].mxu0
    %v357 = vpop.f32.mrb[0].mxu0
    %v358 = vadd.f32 0.0, %v357
    %v359 = vpop.f32.mrb[0].mxu0
    %360 = vmatprep.mubr.bf16.mxu0 0
    %361 = vmatmul.mubr.bf16.gmra.mrb[0].mxu0 %v229
    %v362 = vpop.f32.mrb[0].mxu0
    %v363 = vadd.f32 0.0, %v362
    %v364 = vpop.f32.mrb[0].mxu0
    %v365 = vpop.f32.mrb[0].mxu0
    %v366 = vadd.f32 0.0, %v365
    %v367 = vpop.f32.mrb[0].mxu0
    %368 = vmatprep.mubr.bf16.mxu0 0
    %369 = vmatmul.mubr.bf16.gmra.mrb[0].mxu0 %v230
    %v370 = vpop.f32.mrb[0].mxu0
    %v371 = vadd.f32 0.0, %v370
    %v372 = vpop.f32.mrb[0].mxu0
    %v373 = vpop.f32.mrb[0].mxu0
    %v374 = vadd.f32 0.0, %v373
    %v375 = vpop.f32.mrb[0].mxu0
    %376 = vmatprep.mubr.bf16.mxu0 0
    %377 = vmatmul.mubr.bf16.gmra.mrb[0].mxu0 %v231
    %v378 = vpop.f32.mrb[0].mxu0
    %v379 = vadd.f32 0.0, %v378
    %v380 = vpop.f32.mrb[0].mxu0
    %v381 = vpop.f32.mrb[0].mxu0
    %v382 = vadd.f32 0.0, %v381
    %v383 = vpop.f32.mrb[0].mxu0
    %384 = vdwg.mxu0
    %v385 = vadd.f32 %v160, %v323
    %v386 = vadd.f32 %v161, %v326
    %v387 = vadd.f32 %v162, %v331
    %v388 = vadd.f32 %v163, %v334
    %v389 = vadd.f32 %v164, %v339
    %v390 = vadd.f32 %v165, %v342
    %v391 = vadd.f32 %v166, %v347
    %v392 = vadd.f32 %v167, %v350
    %v393 = vadd.f32 %v168, %v355
    %v394 = vadd.f32 %v169, %v358
    %v395 = vadd.f32 %v170, %v363
    %v396 = vadd.f32 %v171, %v366
    %v397 = vadd.f32 %v172, %v371
    %v398 = vadd.f32 %v173, %v374
    %v399 = vadd.f32 %v174, %v379
    %v400 = vadd.f32 %v175, %v382
    %401 = vst [vmem:[#allocation2] sm:$0xff] %v385
    %402 = vst [vmem:[#allocation2 + $0x8] sm:$0xff] %v386
    %403 = vst [vmem:[#allocation2 + $0x10] sm:$0xff] %v387
    %404 = vst [vmem:[#allocation2 + $0x18] sm:$0xff] %v388
    %405 = vst [vmem:[#allocation2 + $0x20] sm:$0xff] %v389
    %406 = vst [vmem:[#allocation2 + $0x28] sm:$0xff] %v390
    %407 = vst [vmem:[#allocation2 + $0x30] sm:$0xff] %v391
    %408 = vst [vmem:[#allocation2 + $0x38] sm:$0xff] %v392
    %409 = vst [vmem:[#allocation2 + $0x40] sm:$0xff] %v393
    %410 = vst [vmem:[#allocation2 + $0x48] sm:$0xff] %v394
    %411 = vst [vmem:[#allocation2 + $0x50] sm:$0xff] %v395
    %412 = vst [vmem:[#allocation2 + $0x58] sm:$0xff] %v396
    %413 = vst [vmem:[#allocation2 + $0x60] sm:$0xff] %v397
    %414 = vst [vmem:[#allocation2 + $0x68] sm:$0xff] %v398
    %415 = vst [vmem:[#allocation2 + $0x70] sm:$0xff] %v399
    %416 = vst [vmem:[#allocation2 + $0x78] sm:$0xff] %v400
  $region21: #{gcn_forward.7} parent=0 // pred_fallthru
    _
  // Predicated region
  $region22: #{gcn_forward.7} parent=0 // pred_check
    %p417 = pneg %p114
  $region23: #{gcn_forward.7} parent=0 // pred_check_branch
    %419 = sbr.rel (%p417) target = $region25
  $region24: #{gcn_forward.7} parent=0 // pred_region
    %v420 = vld [vmem:[#allocation2] sm:$0xff]
    %v421 = vld [vmem:[#allocation2 + $0x8] sm:$0xff]
    %v422 = vld [vmem:[#allocation2 + $0x10] sm:$0xff]
    %v423 = vld [vmem:[#allocation2 + $0x18] sm:$0xff]
    %v424 = vld [vmem:[#allocation2 + $0x20] sm:$0xff]
    %v425 = vld [vmem:[#allocation2 + $0x28] sm:$0xff]
    %v426 = vld [vmem:[#allocation2 + $0x30] sm:$0xff]
    %v427 = vld [vmem:[#allocation2 + $0x38] sm:$0xff]
    %v428 = vld [vmem:[#allocation2 + $0x40] sm:$0xff]
    %v429 = vld [vmem:[#allocation2 + $0x48] sm:$0xff]
    %v430 = vld [vmem:[#allocation2 + $0x50] sm:$0xff]
    %v431 = vld [vmem:[#allocation2 + $0x58] sm:$0xff]
    %v432 = vld [vmem:[#allocation2 + $0x60] sm:$0xff]
    %v433 = vld [vmem:[#allocation2 + $0x68] sm:$0xff]
    %v434 = vld [vmem:[#allocation2 + $0x70] sm:$0xff]
    %v435 = vld [vmem:[#allocation2 + $0x78] sm:$0xff]
    %v436 = vld [vmem:[%s3] sm:$0x1]
    %v438 = vlaneseq
    %v439 = vshrl.u32 %v438, 7
    %v440 = vsub.s32 0, %v439
    %v441 = vrot.slane %v436, %v440
    %v443 = vadd.f32 %v420, %v441
    %v444 = vadd.f32 %v421, %v441
    %v445 = vadd.f32 %v422, %v441
    %v446 = vadd.f32 %v423, %v441
    %v447 = vadd.f32 %v424, %v441
    %v448 = vadd.f32 %v425, %v441
    %v449 = vadd.f32 %v426, %v441
    %v450 = vadd.f32 %v427, %v441
    %v451 = vadd.f32 %v428, %v441
    %v452 = vadd.f32 %v429, %v441
    %v453 = vadd.f32 %v430, %v441
    %v454 = vadd.f32 %v431, %v441
    %v455 = vadd.f32 %v432, %v441
    %v456 = vadd.f32 %v433, %v441
    %v457 = vadd.f32 %v434, %v441
    %v458 = vadd.f32 %v435, %v441
    %459 = vst [vmem:[%s4] sm:$0xff] %v443
    %460 = vst [vmem:[%s4 + $0x8] sm:$0xff] %v444
    %461 = vst [vmem:[%s4 + $0x10] sm:$0xff] %v445
    %462 = vst [vmem:[%s4 + $0x18] sm:$0xff] %v446
    %463 = vst [vmem:[%s4 + $0x20] sm:$0xff] %v447
    %464 = vst [vmem:[%s4 + $0x28] sm:$0xff] %v448
    %465 = vst [vmem:[%s4 + $0x30] sm:$0xff] %v449
    %466 = vst [vmem:[%s4 + $0x38] sm:$0xff] %v450
    %467 = vst [vmem:[%s4 + $0x40] sm:$0xff] %v451
    %468 = vst [vmem:[%s4 + $0x48] sm:$0xff] %v452
    %469 = vst [vmem:[%s4 + $0x50] sm:$0xff] %v453
    %470 = vst [vmem:[%s4 + $0x58] sm:$0xff] %v454
    %471 = vst [vmem:[%s4 + $0x60] sm:$0xff] %v455
    %472 = vst [vmem:[%s4 + $0x68] sm:$0xff] %v456
    %473 = vst [vmem:[%s4 + $0x70] sm:$0xff] %v457
    %474 = vst [vmem:[%s4 + $0x78] sm:$0xff] %v458
  $region25: #{gcn_forward.7} parent=0 // pred_fallthru
    _
  // Predicated region
  $region26: #{gcn_forward.7} parent=0 // pred_check
    _
  $region27: #{gcn_forward.7} parent=0 // pred_check_branch
    %476 = sbr.rel (0) target = $region29
  $region28: #{gcn_forward.7} parent=0 // pred_region
    _
  $region29: #{gcn_forward.7} parent=0 // pred_fallthru
    _
  // Predicated region
  $region30: #{gcn_forward.7} parent=0 // pred_check
    _
  $region31: #{gcn_forward.7} parent=0 // pred_check_branch
    %478 = sbr.rel (0) target = $region33
  $region32: #{gcn_forward.7} parent=0 // pred_region
    _
  $region33: #{gcn_forward.7} parent=0 // pred_fallthru
    _

// kernel: gcn_forward.5
$region0: #{gcn_forward.5}
  #allocation0 [shape = 'u32[]', space=smem, size = 0x4, offset = 0x4, fixed_abs, tag = 'smem constant byte address 0x4 - core index']
  #allocation1 [shape = 'u32[144,128]{1,0:T(1,128)}', space=vmem, size = 0x12000, scoped, tag = 'internal scratch']
  #allocation2 [shape = 'f32[128,128]{1,0:T(8,128)}', space=vmem, size = 0x10000, scoped, tag = 'scratch operand']
  #allocation3 [shape = 's32[1]{0}', space=sflag, size = 0x4, scoped, tag = 'scoped memory for gcn_forward.5']
  #allocation4 [shape = 'u8[2048]{0}', space=smem, size = 0x800, scoped, tag = 'prefetched SMEM operand 0']
  %s0 = inlined_call_operand.vmem [shape: s32[3,1], index: 0, kind: input, shape index: {}]
  %s1 = inlined_call_operand.vmem [shape: bf16[128,128], index: 1, kind: input, shape index: {}]
  %s2 = inlined_call_operand.vmem [shape: bf16[128,128], index: 2, kind: input, shape index: {}]
  %s3 = inlined_call_operand.vmem [shape: f32[1,128], index: 3, kind: input, shape index: {}]
  %s4 = inlined_call_operand.vmem [shape: bf16[128,128], index: 4, kind: output, shape index: {}]
  %s5 = sld [smem:[#allocation0]]
  $region34: #{gcn_forward.5} parent=0
    _
  %s7 = ssub.s32 1, %s5
  %s8 = scalar_select 0, %s7, %s5
  %s9 = sshll.u32 %s0, 4
  %s10 = int_to_ptr.vmem [resolvable:$true] %s9
  %12 = dma.vmem_to_smem %s10, 64, [#allocation4], [#allocation3]
  %13 = dma.done [#allocation3], 64
  %14 = sfence
  // Predicated region
  $region2: #{gcn_forward.5} parent=0 // pred_check
    _
  $region3: #{gcn_forward.5} parent=0 // pred_check_branch
    %16 = sbr.rel (0) target = $region5
  $region4: #{gcn_forward.5} parent=0 // pred_region
    %s17 = sadd.s32 0, 0
    %s18 = sshra.s32 %s17, 7
    %s19 = sand.u32 %s17, 127
    %s20 = sadd.s32 %s18, 1
    %s21 = smul.u32 %s20, 128
    %s22 = sshra.s32 %s17, 7
    %s23 = sand.u32 %s17, 127
    %s24 = sadd.s32 %s21, %s23
    %s25 = sld [smem:[#allocation4 + %s24]]
    %s26 = sadd.s32 %s18, 2
    %s27 = smul.u32 %s26, 128
    %s28 = sadd.s32 %s27, %s23
    %s29 = sld [smem:[#allocation4 + %s28]]
    %s30 = smul.u32 16, %s25
    %p31 = scmp.lt.s32.totalorder %s30, 15
    %s32 = scalar_select %p31, %s30, 15
    %p33 = scmp.lt.s32.totalorder %s29, 0
    %s34 = scalar_select %p33, %s29, 0
    %s35 = sadd.s32 %s34, %s32
    %s36 = smul.addr %s35, 4
    %s37 = scalar_lea.vmem %s1, %s36
    %s38 = sadd.s32 0, 0
    %s39 = sshra.s32 %s38, 7
    %s40 = sand.u32 %s38, 127
    %s41 = sadd.s32 %s39, 1
    %s42 = smul.u32 %s41, 128
    %s43 = sshra.s32 %s38, 7
    %s44 = sand.u32 %s38, 127
    %s45 = sadd.s32 %s42, %s44
    %s46 = sld [smem:[#allocation4 + %s45]]
    %s47 = sadd.s32 %s39, 2
    %s48 = smul.u32 %s47, 128
    %s49 = sadd.s32 %s48, %s44
    %s50 = sld [smem:[#allocation4 + %s49]]
    %s51 = smul.u32 16, %s46
  $region5: #{gcn_forward.5} parent=0 // pred_fallthru
    _
  // Predicated region
  $region6: #{gcn_forward.5} parent=0 // pred_check
    _
  $region7: #{gcn_forward.5} parent=0 // pred_check_branch
    %53 = sbr.rel (0) target = $region9
  $region8: #{gcn_forward.5} parent=0 // pred_region
    _
  $region9: #{gcn_forward.5} parent=0 // pred_fallthru
    _
  // Predicated region
  $region10: #{gcn_forward.5} parent=0 // pred_check
    _
  $region11: #{gcn_forward.5} parent=0 // pred_check_branch
    %55 = sbr.rel (0) target = $region13
  $region12: #{gcn_forward.5} parent=0 // pred_region
    _
  $region13: #{gcn_forward.5} parent=0 // pred_fallthru
    _
  %s56 = sadd.s32 0, 0
  %s57 = sshra.s32 %s56, 7
  %s58 = sand.u32 %s56, 127
  %s59 = sadd.s32 %s57, 1
  %s60 = smul.u32 %s59, 128
  %s61 = sshra.s32 %s56, 7
  %s62 = sand.u32 %s56, 127
  %s63 = sadd.s32 %s60, %s62
  %s64 = sld [smem:[#allocation4 + %s63]]
  %s65 = sadd.s32 %s57, 2
  %s66 = smul.u32 %s65, 128
  %s67 = sadd.s32 %s66, %s62
  %s68 = sld [smem:[#allocation4 + %s67]]
  %s69 = smul.u32 16, %s64
  %p70 = scmp.lt.s32.totalorder %s69, 15
  %s71 = scalar_select %p70, %s69, 15
  %p72 = scmp.lt.s32.totalorder %s68, 0
  %s73 = scalar_select %p72, %s68, 0
  %s74 = sadd.s32 %s73, %s71
  %s75 = smul.addr %s74, 4
  %s76 = scalar_lea.vmem %s1, %s75
  %s77 = sadd.s32 0, 0
  %s78 = sshra.s32 %s77, 7
  %s79 = sand.u32 %s77, 127
  %s80 = sadd.s32 %s78, 1
  %s81 = smul.u32 %s80, 128
  %s82 = sshra.s32 %s77, 7
  %s83 = sand.u32 %s77, 127
  %s84 = sadd.s32 %s81, %s83
  %s85 = sld [smem:[#allocation4 + %s84]]
  %s86 = sadd.s32 %s78, 2
  %s87 = smul.u32 %s86, 128
  %s88 = sadd.s32 %s87, %s83
  %s89 = sld [smem:[#allocation4 + %s88]]
  %s90 = smul.u32 16, %s85
  %p91 = scmp.lt.s32.totalorder %s90, 15
  %s92 = scalar_select %p91, %s90, 15
  %p93 = scmp.lt.s32.totalorder %s89, 0
  %s94 = scalar_select %p93, %s89, 0
  %s95 = sadd.s32 %s94, %s92
  %s96 = smul.addr %s95, 4
  %s97 = scalar_lea.vmem %s1, %s96
  %s98 = sadd.s32 0, 0
  %s99 = sshra.s32 %s98, 7
  %s100 = sand.u32 %s98, 127
  %s101 = sadd.s32 %s99, 1
  %s102 = smul.u32 %s101, 128
  %s103 = sshra.s32 %s98, 7
  %s104 = sand.u32 %s98, 127
  %s105 = sadd.s32 %s102, %s104
  %s106 = sld [smem:[#allocation4 + %s105]]
  %s107 = sadd.s32 %s99, 2
  %s108 = smul.u32 %s107, 128
  %s109 = sadd.s32 %s108, %s104
  %s110 = sld [smem:[#allocation4 + %s109]]
  %s111 = smul.u32 16, %s106
  %s113 = sadd.s32 0, 0
  %p114 = scmp.eq.s32.totalorder 0, 0
  // Predicated region
  $region14: #{gcn_forward.5} parent=0 // pred_check
    %p115 = pneg %p114
  $region15: #{gcn_forward.5} parent=0 // pred_check_branch
    %117 = sbr.rel (%p115) target = $region17
  $region16: #{gcn_forward.5} parent=0 // pred_region
    %118 = vst [vmem:[#allocation2] sm:$0xff] 0.0
    %119 = vst [vmem:[#allocation2 + $0x8] sm:$0xff] 0.0
    %120 = vst [vmem:[#allocation2 + $0x10] sm:$0xff] 0.0
    %121 = vst [vmem:[#allocation2 + $0x18] sm:$0xff] 0.0
    %122 = vst [vmem:[#allocation2 + $0x20] sm:$0xff] 0.0
    %123 = vst [vmem:[#allocation2 + $0x28] sm:$0xff] 0.0
    %124 = vst [vmem:[#allocation2 + $0x30] sm:$0xff] 0.0
    %125 = vst [vmem:[#allocation2 + $0x38] sm:$0xff] 0.0
    %126 = vst [vmem:[#allocation2 + $0x40] sm:$0xff] 0.0
    %127 = vst [vmem:[#allocation2 + $0x48] sm:$0xff] 0.0
    %128 = vst [vmem:[#allocation2 + $0x50] sm:$0xff] 0.0
    %129 = vst [vmem:[#allocation2 + $0x58] sm:$0xff] 0.0
    %130 = vst [vmem:[#allocation2 + $0x60] sm:$0xff] 0.0
    %131 = vst [vmem:[#allocation2 + $0x68] sm:$0xff] 0.0
    %132 = vst [vmem:[#allocation2 + $0x70] sm:$0xff] 0.0
    %133 = vst [vmem:[#allocation2 + $0x78] sm:$0xff] 0.0
  $region17: #{gcn_forward.5} parent=0 // pred_fallthru
    _
  %s134 = sld [smem:[#allocation4 + %s113]]
  %p135 = scmp.ne.s32.totalorder %s134, 0
  // Predicated region
  $region18: #{gcn_forward.5} parent=0 // pred_check
    %p136 = pneg %p135
  $region19: #{gcn_forward.5} parent=0 // pred_check_branch
    %138 = sbr.rel (%p136) target = $region21
  $region20: #{gcn_forward.5} parent=0 // pred_region
    %s139 = smul.u32 0, 128
    %s140 = sshra.s32 %s139, 3
    %s141 = sand.u32 %s139, 7
    %s142 = smul.addr %s140, 4
    %s143 = scalar_lea.vmem %s2, %s142
    %v144 = vld [vmem:[%s143] sm:$0xf]
    %v145 = vld [vmem:[%s143 + $0x4] sm:$0xf]
    %v146 = vld [vmem:[%s143 + $0x8] sm:$0xf]
    %v147 = vld [vmem:[%s143 + $0xc] sm:$0xf]
    %v148 = vld [vmem:[%s143 + $0x10] sm:$0xf]
    %v149 = vld [vmem:[%s143 + $0x14] sm:$0xf]
    %v150 = vld [vmem:[%s143 + $0x18] sm:$0xf]
    %v151 = vld [vmem:[%s143 + $0x1c] sm:$0xf]
    %v152 = vld [vmem:[%s143 + $0x20] sm:$0xf]
    %v153 = vld [vmem:[%s143 + $0x24] sm:$0xf]
    %v154 = vld [vmem:[%s143 + $0x28] sm:$0xf]
    %v155 = vld [vmem:[%s143 + $0x2c] sm:$0xf]
    %v156 = vld [vmem:[%s143 + $0x30] sm:$0xf]
    %v157 = vld [vmem:[%s143 + $0x34] sm:$0xf]
    %v158 = vld [vmem:[%s143 + $0x38] sm:$0xf]
    %v159 = vld [vmem:[%s143 + $0x3c] sm:$0xf]
    %v160 = vld [vmem:[#allocation2] sm:$0xff]
    %v161 = vld [vmem:[#allocation2 + $0x8] sm:$0xff]
    %v162 = vld [vmem:[#allocation2 + $0x10] sm:$0xff]
    %v163 = vld [vmem:[#allocation2 + $0x18] sm:$0xff]
    %v164 = vld [vmem:[#allocation2 + $0x20] sm:$0xff]
    %v165 = vld [vmem:[#allocation2 + $0x28] sm:$0xff]
    %v166 = vld [vmem:[#allocation2 + $0x30] sm:$0xff]
    %v167 = vld [vmem:[#allocation2 + $0x38] sm:$0xff]
    %v168 = vld [vmem:[#allocation2 + $0x40] sm:$0xff]
    %v169 = vld [vmem:[#allocation2 + $0x48] sm:$0xff]
    %v170 = vld [vmem:[#allocation2 + $0x50] sm:$0xff]
    %v171 = vld [vmem:[#allocation2 + $0x58] sm:$0xff]
    %v172 = vld [vmem:[#allocation2 + $0x60] sm:$0xff]
    %v173 = vld [vmem:[#allocation2 + $0x68] sm:$0xff]
    %v174 = vld [vmem:[#allocation2 + $0x70] sm:$0xff]
    %v175 = vld [vmem:[#allocation2 + $0x78] sm:$0xff]
    %v176 = vld [vmem:[%s97] sm:$0xf]
    %v177 = vld [vmem:[%s97 + $0x4] sm:$0xf]
    %v178 = vld [vmem:[%s97 + $0x8] sm:$0xf]
    %v179 = vld [vmem:[%s97 + $0xc] sm:$0xf]
    %v180 = vld [vmem:[%s97 + $0x10] sm:$0xf]
    %v181 = vld [vmem:[%s97 + $0x14] sm:$0xf]
    %v182 = vld [vmem:[%s97 + $0x18] sm:$0xf]
    %v183 = vld [vmem:[%s97 + $0x1c] sm:$0xf]
    %v184 = vld [vmem:[%s97 + $0x20] sm:$0xf]
    %v185 = vld [vmem:[%s97 + $0x24] sm:$0xf]
    %v186 = vld [vmem:[%s97 + $0x28] sm:$0xf]
    %v187 = vld [vmem:[%s97 + $0x2c] sm:$0xf]
    %v188 = vld [vmem:[%s97 + $0x30] sm:$0xf]
    %v189 = vld [vmem:[%s97 + $0x34] sm:$0xf]
    %v190 = vld [vmem:[%s97 + $0x38] sm:$0xf]
    %v191 = vld [vmem:[%s97 + $0x3c] sm:$0xf]
    %v208 = vunpack.c.l.b16 %v176
    %v209 = vunpack.c.l.b16 %v177
    %v210 = vunpack.c.l.b16 %v178
    %v211 = vunpack.c.l.b16 %v179
    %v212 = vunpack.c.l.b16 %v180
    %v213 = vunpack.c.l.b16 %v181
    %v214 = vunpack.c.l.b16 %v182
    %v215 = vunpack.c.l.b16 %v183
    %v216 = vunpack.c.l.b16 %v184
    %v217 = vunpack.c.l.b16 %v185
    %v218 = vunpack.c.l.b16 %v186
    %v219 = vunpack.c.l.b16 %v187
    %v220 = vunpack.c.l.b16 %v188
    %v221 = vunpack.c.l.b16 %v189
    %v222 = vunpack.c.l.b16 %v190
    %v223 = vunpack.c.l.b16 %v191
    %v224 = vpack.c.b16 %v209, %v208
    %v225 = vpack.c.b16 %v211, %v210
    %v226 = vpack.c.b16 %v213, %v212
    %v227 = vpack.c.b16 %v215, %v214
    %v228 = vpack.c.b16 %v217, %v216
    %v229 = vpack.c.b16 %v219, %v218
    %v230 = vpack.c.b16 %v221, %v220
    %v231 = vpack.c.b16 %v223, %v222
    %v256 = vunpack.c.l.b16 %v144
    %v257 = vunpack.c.l.b16 %v145
    %v258 = vunpack.c.l.b16 %v146
    %v259 = vunpack.c.l.b16 %v147
    %v260 = vunpack.c.l.b16 %v148
    %v261 = vunpack.c.l.b16 %v149
    %v262 = vunpack.c.l.b16 %v150
    %v263 = vunpack.c.l.b16 %v151
    %v264 = vunpack.c.l.b16 %v152
    %v265 = vunpack.c.l.b16 %v153
    %v266 = vunpack.c.l.b16 %v154
    %v267 = vunpack.c.l.b16 %v155
    %v268 = vunpack.c.l.b16 %v156
    %v269 = vunpack.c.l.b16 %v157
    %v270 = vunpack.c.l.b16 %v158
    %v271 = vunpack.c.l.b16 %v159
    %v272 = vpack.c.b16 %v257, %v256
    %v273 = vpack.c.b16 %v259, %v258
    %v274 = vpack.c.b16 %v261, %v260
    %v275 = vpack.c.b16 %v263, %v262
    %v276 = vpack.c.b16 %v265, %v264
    %v277 = vpack.c.b16 %v267, %v266
    %v278 = vpack.c.b16 %v269, %v268
    %v279 = vpack.c.b16 %v271, %v270
    %288 = vmatprep.subr.bf16.mxu0 0
    %289 = vmatpush1.bf16.msra.mxu0 %v272
    %290 = vmatprep.subr.bf16.mxu0 0
    %291 = vmatpush1.bf16.msra.mxu0 %v273
    %292 = vmatprep.subr.bf16.mxu0 0
    %293 = vmatpush1.bf16.msra.mxu0 %v274
    %294 = vmatprep.subr.bf16.mxu0 0
    %295 = vmatpush1.bf16.msra.mxu0 %v275
    %296 = vmatprep.subr.bf16.mxu0 0
    %297 = vmatpush1.bf16.msra.mxu0 %v276
    %298 = vmatprep.subr.bf16.mxu0 0
    %299 = vmatpush1.bf16.msra.mxu0 %v277
    %300 = vmatprep.subr.bf16.mxu0 0
    %301 = vmatpush1.bf16.msra.mxu0 %v278
    %302 = vmatprep.subr.bf16.mxu0 0
    %303 = vmatpush1.bf16.msra.mxu0 %v279
    %304 = vmatprep.subr.bf16.mxu0 0
    %305 = vmatpush1.bf16.msra.mxu0 0
    %306 = vmatprep.subr.bf16.mxu0 0
    %307 = vmatpush1.bf16.msra.mxu0 0
    %308 = vmatprep.subr.bf16.mxu0 0
    %309 = vmatpush1.bf16.msra.mxu0 0
    %310 = vmatprep.subr.bf16.mxu0 0
    %311 = vmatpush1.bf16.msra.mxu0 0
    %312 = vmatprep.subr.bf16.mxu0 0
    %313 = vmatpush1.bf16.msra.mxu0 0
    %314 = vmatprep.subr.bf16.mxu0 0
    %315 = vmatpush1.bf16.msra.mxu0 0
    %316 = vmatprep.subr.bf16.mxu0 0
    %317 = vmatpush1.bf16.msra.mxu0 0
    %318 = vmatprep.subr.bf16.mxu0 0
    %319 = vmatpush1.bf16.msra.mxu0 0
    %320 = vmatprep.mubr.bf16.mxu0 0
    %321 = vmatmul.mubr.bf16.gmra.mrb[0].mxu0 %v224
    %v322 = vpop.f32.mrb[0].mxu0
    %v323 = vadd.f32 0.0, %v322
    %v324 = vpop.f32.mrb[0].mxu0
    %v325 = vpop.f32.mrb[0].mxu0
    %v326 = vadd.f32 0.0, %v325
    %v327 = vpop.f32.mrb[0].mxu0
    %328 = vmatprep.mubr.bf16.mxu0 0
    %329 = vmatmul.mubr.bf16.gmra.mrb[0].mxu0 %v225
    %v330 = vpop.f32.mrb[0].mxu0
    %v331 = vadd.f32 0.0, %v330
    %v332 = vpop.f32.mrb[0].mxu0
    %v333 = vpop.f32.mrb[0].mxu0
    %v334 = vadd.f32 0.0, %v333
    %v335 = vpop.f32.mrb[0].mxu0
    %336 = vmatprep.mubr.bf16.mxu0 0
    %337 = vmatmul.mubr.bf16.gmra.mrb[0].mxu0 %v226
    %v338 = vpop.f32.mrb[0].mxu0
    %v339 = vadd.f32 0.0, %v338
    %v340 = vpop.f32.mrb[0].mxu0
    %v341 = vpop.f32.mrb[0].mxu0
    %v342 = vadd.f32 0.0, %v341
    %v343 = vpop.f32.mrb[0].mxu0
    %344 = vmatprep.mubr.bf16.mxu0 0
    %345 = vmatmul.mubr.bf16.gmra.mrb[0].mxu0 %v227
    %v346 = vpop.f32.mrb[0].mxu0
    %v347 = vadd.f32 0.0, %v346
    %v348 = vpop.f32.mrb[0].mxu0
    %v349 = vpop.f32.mrb[0].mxu0
    %v350 = vadd.f32 0.0, %v349
    %v351 = vpop.f32.mrb[0].mxu0
    %352 = vmatprep.mubr.bf16.mxu0 0
    %353 = vmatmul.mubr.bf16.gmra.mrb[0].mxu0 %v228
    %v354 = vpop.f32.mrb[0].mxu0
    %v355 = vadd.f32 0.0, %v354
    %v356 = vpop.f32.mrb[0].mxu0
    %v357 = vpop.f32.mrb[0].mxu0
    %v358 = vadd.f32 0.0, %v357
    %v359 = vpop.f32.mrb[0].mxu0
    %360 = vmatprep.mubr.bf16.mxu0 0
    %361 = vmatmul.mubr.bf16.gmra.mrb[0].mxu0 %v229
    %v362 = vpop.f32.mrb[0].mxu0
    %v363 = vadd.f32 0.0, %v362
    %v364 = vpop.f32.mrb[0].mxu0
    %v365 = vpop.f32.mrb[0].mxu0
    %v366 = vadd.f32 0.0, %v365
    %v367 = vpop.f32.mrb[0].mxu0
    %368 = vmatprep.mubr.bf16.mxu0 0
    %369 = vmatmul.mubr.bf16.gmra.mrb[0].mxu0 %v230
    %v370 = vpop.f32.mrb[0].mxu0
    %v371 = vadd.f32 0.0, %v370
    %v372 = vpop.f32.mrb[0].mxu0
    %v373 = vpop.f32.mrb[0].mxu0
    %v374 = vadd.f32 0.0, %v373
    %v375 = vpop.f32.mrb[0].mxu0
    %376 = vmatprep.mubr.bf16.mxu0 0
    %377 = vmatmul.mubr.bf16.gmra.mrb[0].mxu0 %v231
    %v378 = vpop.f32.mrb[0].mxu0
    %v379 = vadd.f32 0.0, %v378
    %v380 = vpop.f32.mrb[0].mxu0
    %v381 = vpop.f32.mrb[0].mxu0
    %v382 = vadd.f32 0.0, %v381
    %v383 = vpop.f32.mrb[0].mxu0
    %384 = vdwg.mxu0
    %v385 = vadd.f32 %v160, %v323
    %v386 = vadd.f32 %v161, %v326
    %v387 = vadd.f32 %v162, %v331
    %v388 = vadd.f32 %v163, %v334
    %v389 = vadd.f32 %v164, %v339
    %v390 = vadd.f32 %v165, %v342
    %v391 = vadd.f32 %v166, %v347
    %v392 = vadd.f32 %v167, %v350
    %v393 = vadd.f32 %v168, %v355
    %v394 = vadd.f32 %v169, %v358
    %v395 = vadd.f32 %v170, %v363
    %v396 = vadd.f32 %v171, %v366
    %v397 = vadd.f32 %v172, %v371
    %v398 = vadd.f32 %v173, %v374
    %v399 = vadd.f32 %v174, %v379
    %v400 = vadd.f32 %v175, %v382
    %401 = vst [vmem:[#allocation2] sm:$0xff] %v385
    %402 = vst [vmem:[#allocation2 + $0x8] sm:$0xff] %v386
    %403 = vst [vmem:[#allocation2 + $0x10] sm:$0xff] %v387
    %404 = vst [vmem:[#allocation2 + $0x18] sm:$0xff] %v388
    %405 = vst [vmem:[#allocation2 + $0x20] sm:$0xff] %v389
    %406 = vst [vmem:[#allocation2 + $0x28] sm:$0xff] %v390
    %407 = vst [vmem:[#allocation2 + $0x30] sm:$0xff] %v391
    %408 = vst [vmem:[#allocation2 + $0x38] sm:$0xff] %v392
    %409 = vst [vmem:[#allocation2 + $0x40] sm:$0xff] %v393
    %410 = vst [vmem:[#allocation2 + $0x48] sm:$0xff] %v394
    %411 = vst [vmem:[#allocation2 + $0x50] sm:$0xff] %v395
    %412 = vst [vmem:[#allocation2 + $0x58] sm:$0xff] %v396
    %413 = vst [vmem:[#allocation2 + $0x60] sm:$0xff] %v397
    %414 = vst [vmem:[#allocation2 + $0x68] sm:$0xff] %v398
    %415 = vst [vmem:[#allocation2 + $0x70] sm:$0xff] %v399
    %416 = vst [vmem:[#allocation2 + $0x78] sm:$0xff] %v400
  $region21: #{gcn_forward.5} parent=0 // pred_fallthru
    _
  // Predicated region
  $region22: #{gcn_forward.5} parent=0 // pred_check
    %p417 = pneg %p114
  $region23: #{gcn_forward.5} parent=0 // pred_check_branch
    %419 = sbr.rel (%p417) target = $region25
  $region24: #{gcn_forward.5} parent=0 // pred_region
    %v420 = vld [vmem:[#allocation2] sm:$0xff]
    %v421 = vld [vmem:[#allocation2 + $0x8] sm:$0xff]
    %v422 = vld [vmem:[#allocation2 + $0x10] sm:$0xff]
    %v423 = vld [vmem:[#allocation2 + $0x18] sm:$0xff]
    %v424 = vld [vmem:[#allocation2 + $0x20] sm:$0xff]
    %v425 = vld [vmem:[#allocation2 + $0x28] sm:$0xff]
    %v426 = vld [vmem:[#allocation2 + $0x30] sm:$0xff]
    %v427 = vld [vmem:[#allocation2 + $0x38] sm:$0xff]
    %v428 = vld [vmem:[#allocation2 + $0x40] sm:$0xff]
    %v429 = vld [vmem:[#allocation2 + $0x48] sm:$0xff]
    %v430 = vld [vmem:[#allocation2 + $0x50] sm:$0xff]
    %v431 = vld [vmem:[#allocation2 + $0x58] sm:$0xff]
    %v432 = vld [vmem:[#allocation2 + $0x60] sm:$0xff]
    %v433 = vld [vmem:[#allocation2 + $0x68] sm:$0xff]
    %v434 = vld [vmem:[#allocation2 + $0x70] sm:$0xff]
    %v435 = vld [vmem:[#allocation2 + $0x78] sm:$0xff]
    %v436 = vld [vmem:[%s3] sm:$0x1]
    %v438 = vlaneseq
    %v439 = vshrl.u32 %v438, 7
    %v440 = vsub.s32 0, %v439
    %v441 = vrot.slane %v436, %v440
    %v443 = vadd.f32 %v420, %v441
    %v444 = vadd.f32 %v421, %v441
    %v445 = vadd.f32 %v422, %v441
    %v446 = vadd.f32 %v423, %v441
    %v447 = vadd.f32 %v424, %v441
    %v448 = vadd.f32 %v425, %v441
    %v449 = vadd.f32 %v426, %v441
    %v450 = vadd.f32 %v427, %v441
    %v451 = vadd.f32 %v428, %v441
    %v452 = vadd.f32 %v429, %v441
    %v453 = vadd.f32 %v430, %v441
    %v454 = vadd.f32 %v431, %v441
    %v455 = vadd.f32 %v432, %v441
    %v456 = vadd.f32 %v433, %v441
    %v457 = vadd.f32 %v434, %v441
    %v458 = vadd.f32 %v435, %v441
    %v459 = vmax.f32 %v443, 0.0
    %v460 = vmax.f32 %v444, 0.0
    %v461 = vmax.f32 %v445, 0.0
    %v462 = vmax.f32 %v446, 0.0
    %v463 = vmax.f32 %v447, 0.0
    %v464 = vmax.f32 %v448, 0.0
    %v465 = vmax.f32 %v449, 0.0
    %v466 = vmax.f32 %v450, 0.0
    %v467 = vmax.f32 %v451, 0.0
    %v468 = vmax.f32 %v452, 0.0
    %v469 = vmax.f32 %v453, 0.0
    %v470 = vmax.f32 %v454, 0.0
    %v471 = vmax.f32 %v455, 0.0
    %v472 = vmax.f32 %v456, 0.0
    %v473 = vmax.f32 %v457, 0.0
    %v474 = vmax.f32 %v458, 0.0
    %v475 = vpack.c.bf16 %v460, %v459
    %v476 = vpack.c.bf16 %v462, %v461
    %v477 = vpack.c.bf16 %v464, %v463
    %v478 = vpack.c.bf16 %v466, %v465
    %v479 = vpack.c.bf16 %v468, %v467
    %v480 = vpack.c.bf16 %v470, %v469
    %v481 = vpack.c.bf16 %v472, %v471
    %v482 = vpack.c.bf16 %v474, %v473
    %v491 = vunpack.c.l.b16 %v475
    %v492 = vunpack.c.h.b16 %v475
    %v493 = vunpack.c.l.b16 %v476
    %v494 = vunpack.c.h.b16 %v476
    %v495 = vunpack.c.l.b16 %v477
    %v496 = vunpack.c.h.b16 %v477
    %v497 = vunpack.c.l.b16 %v478
    %v498 = vunpack.c.h.b16 %v478
    %v499 = vunpack.c.l.b16 %v479
    %v500 = vunpack.c.h.b16 %v479
    %v501 = vunpack.c.l.b16 %v480
    %v502 = vunpack.c.h.b16 %v480
    %v503 = vunpack.c.l.b16 %v481
    %v504 = vunpack.c.h.b16 %v481
    %v505 = vunpack.c.l.b16 %v482
    %v506 = vunpack.c.h.b16 %v482
    %v507 = vpack.c.b16 %v491, %v491
    %v508 = vpack.c.b16 %v492, %v492
    %v509 = vpack.c.b16 %v493, %v493
    %v510 = vpack.c.b16 %v494, %v494
    %v511 = vpack.c.b16 %v495, %v495
    %v512 = vpack.c.b16 %v496, %v496
    %v513 = vpack.c.b16 %v497, %v497
    %v514 = vpack.c.b16 %v498, %v498
    %v515 = vpack.c.b16 %v499, %v499
    %v516 = vpack.c.b16 %v500, %v500
    %v517 = vpack.c.b16 %v501, %v501
    %v518 = vpack.c.b16 %v502, %v502
    %v519 = vpack.c.b16 %v503, %v503
    %v520 = vpack.c.b16 %v504, %v504
    %v521 = vpack.c.b16 %v505, %v505
    %v522 = vpack.c.b16 %v506, %v506
    %539 = vst [vmem:[%s4] sm:$0xf] %v507
    %540 = vst [vmem:[%s4 + $0x4] sm:$0xf] %v508
    %541 = vst [vmem:[%s4 + $0x8] sm:$0xf] %v509
    %542 = vst [vmem:[%s4 + $0xc] sm:$0xf] %v510
    %543 = vst [vmem:[%s4 + $0x10] sm:$0xf] %v511
    %544 = vst [vmem:[%s4 + $0x14] sm:$0xf] %v512
    %545 = vst [vmem:[%s4 + $0x18] sm:$0xf] %v513
    %546 = vst [vmem:[%s4 + $0x1c] sm:$0xf] %v514
    %547 = vst [vmem:[%s4 + $0x20] sm:$0xf] %v515
    %548 = vst [vmem:[%s4 + $0x24] sm:$0xf] %v516
    %549 = vst [vmem:[%s4 + $0x28] sm:$0xf] %v517
    %550 = vst [vmem:[%s4 + $0x2c] sm:$0xf] %v518
    %551 = vst [vmem:[%s4 + $0x30] sm:$0xf] %v519
    %552 = vst [vmem:[%s4 + $0x34] sm:$0xf] %v520
    %553 = vst [vmem:[%s4 + $0x38] sm:$0xf] %v521
    %554 = vst [vmem:[%s4 + $0x3c] sm:$0xf] %v522
  $region25: #{gcn_forward.5} parent=0 // pred_fallthru
    _
  // Predicated region
  $region26: #{gcn_forward.5} parent=0 // pred_check
    _
  $region27: #{gcn_forward.5} parent=0 // pred_check_branch
    %556 = sbr.rel (0) target = $region29
  $region28: #{gcn_forward.5} parent=0 // pred_region
    _
  $region29: #{gcn_forward.5} parent=0 // pred_fallthru
    _
  // Predicated region
  $region30: #{gcn_forward.5} parent=0 // pred_check
    _
  $region31: #{gcn_forward.5} parent=0 // pred_check_branch
    %558 = sbr.rel (0) target = $region33
  $region32: #{gcn_forward.5} parent=0 // pred_region
    _
  $region33: #{gcn_forward.5} parent=0 // pred_fallthru
    _

</llo_original>
